<compile_context>
chip_gen: v5e
topology: v5e:2x2
jax: 0.10.0
libtpu: 0.0.40
codegen_flags: <defaults>
</compile_context>

<pallas_src>
import functools

import jax
import jax.numpy as jnp
from jax.experimental import pallas as pl
from jax.experimental.pallas import tpu as pltpu

KH = KW = 7
PAD = 3
C = 16            # in/out channels, fixed by the module


def _fused_model_kernel(x_ref, w1_ref, b1_ref, w2_ref, b2_ref, w3_ref, b3_ref,
                        o_ref, xpad_ref, *, H, W):
    """conv1 -> relu(conv2 + x) -> conv3 + x, fully fused in VMEM (one sample).

    x_ref, o_ref : (1, H, W*C)       lane-dense activations (W*C == 128)
    w*_ref       : (KH, W*C, W*C)    banded (block-Toeplitz) matmul weights
    b*_ref       : (1, W*C)          lane-tiled biases
    xpad_ref     : (H+2*PAD, W*C)    vertically zero-bordered activation slab
    """
    WC = W * C

    # Zero the padded slab every grid step (2 unmasked vreg stores).  Borders
    # are never rewritten, so they provide the vertical "same" padding for all
    # three convs; the interior is overwritten per conv.  Doing it every step
    # keeps the kernel correct regardless of which TensorCore runs the step.
    xpad_ref[...] = jnp.zeros_like(xpad_ref)

    def conv(act, w_ref, b_ref):
        """act: (H, W*C) activation -> (H, W*C) conv output with bias added."""
        # Full-lane interior scatter (128-lane dense, sublane offset PAD).
        xpad_ref[PAD:PAD + H, :] = act

        # 7 lane-dense MXU dots; the banded weight already encodes the 7 kw
        # taps and the horizontal zero padding.  Accumulate from the first dot.
        acc = jnp.dot(xpad_ref[0:H, :], w_ref[0],
                      preferred_element_type=jnp.float32)
        for kh in range(1, KH):
            acc = acc + jnp.dot(xpad_ref[kh:kh + H, :], w_ref[kh],
                                preferred_element_type=jnp.float32)
        return acc + b_ref[...]

    x = x_ref[0]                                            # (H, W*C)

    v1 = conv(x, w1_ref, b1_ref)                            # conv1(x)
    # v2 = v1 + x ; v3 = relu(v2)  -> dead code in the original forward.
    v6 = jnp.maximum(conv(v1, w2_ref, b2_ref) + x, 0.0)     # relu(conv2(v1)+x)
    out = conv(v6, w3_ref, b3_ref) + x                      # conv3(v6) + x

    o_ref[0] = out.astype(o_ref.dtype)                      # 128-lane store


def _fused_forward_ld(x_ld, w1, b1, w2, b2, w3, b3, *, N, H, W):
    """x_ld: (N, H, W*C) lane-dense f32; w*: (KH, W*C, W*C); b*: (1, W*C)."""
    HP = H + 2 * PAD
    WC = W * C
    kern = functools.partial(_fused_model_kernel, H=H, W=W)

    act_spec = pl.BlockSpec((1, H, WC), lambda n: (n, 0, 0))
    w_spec = pl.BlockSpec((KH, WC, WC), lambda n: (0, 0, 0))
    b_spec = pl.BlockSpec((1, WC), lambda n: (0, 0))

    return pl.pallas_call(
        kern,
        out_shape=jax.ShapeDtypeStruct((N, H, WC), x_ld.dtype),
        grid=(N,),                                   # one sample per step
        in_specs=[act_spec, w_spec, b_spec, w_spec, b_spec, w_spec, b_spec],
        out_specs=act_spec,
        scratch_shapes=[
            pltpu.VMEM((HP, WC), jnp.float32),       # vertically padded slab
        ],
        compiler_params=pltpu.CompilerParams(
            # "parallel" -> the two batch steps land on both TCs on v7x;
            # harmless (sequential) on v5e / v6e.
            dimension_semantics=("parallel",),
            vmem_limit_bytes=16 * 1024 * 1024,       # working set < 3 MiB
        ),
    )(x_ld, w1, b1, w2, b2, w3, b3)


def _make_band(w_hwio, W):
    """HWIO (KH, KW, C, C) -> banded matmul weight (KH, W*C, W*C).

    band[kh, wp*C+ci, w*C+co] = w_hwio[kh, wp-w+PAD, ci, co] if the tap is in
    range, else 0 -- i.e. the kw taps and horizontal zero padding are folded
    into a block-Toeplitz matrix so the conv is a lane-dense matmul.
    """
    wp = jnp.arange(W)[:, None]                     # input column
    wo = jnp.arange(W)[None, :]                     # output column
    kw = wp - wo + PAD                              # (W, W) tap index
    valid = (kw >= 0) & (kw < KW)
    kw_c = jnp.clip(kw, 0, KW - 1)
    band = w_hwio[:, kw_c]                          # (KH, W, W, C, C)
    band = jnp.where(valid[None, :, :, None, None], band, 0.0)
    band = jnp.transpose(band, (0, 1, 3, 2, 4))     # (kh, wp, ci, w, co)
    return band.reshape(KH, W * C, W * C)


def _make_bias_row(b, W):
    """(C,) bias -> lane-dense (1, W*C) row: row[0, w*C+co] = b[co]."""
    return jnp.tile(b, (W,)).reshape(1, W * C)


@jax.jit
def model_forward(x_nchw, params):
    """Reproduces Model.forward. x_nchw: (N, 16, H, W) f32, returns same layout."""
    (w1, b1), (w2, b2), (w3, b3) = params
    N, Cin, H, W = x_nchw.shape
    assert Cin == C

    # Layout plumbing only: NCHW -> lane-dense (N, H, W*C) NHWC slab.
    x_ld = jnp.transpose(x_nchw, (0, 2, 3, 1)).reshape(N, H, W * C)

    out_ld = _fused_forward_ld(
        x_ld,
        _make_band(w1, W), _make_bias_row(b1, W),
        _make_band(w2, W), _make_bias_row(b2, W),
        _make_band(w3, W), _make_bias_row(b3, W),
        N=N, H=H, W=W)

    return jnp.transpose(out_ld.reshape(N, H, W, C), (0, 3, 1, 2))


def _init_conv_params(key, cin, cout):
    kw_key, b_key = jax.random.split(key)
    fan_in = cin * KH * KW
    bound = 1.0 / (fan_in ** 0.5)
    # HWIO layout for the kernel / reference.
    w = jax.random.uniform(kw_key, (KH, KW, cin, cout), jnp.float32,
                           minval=-bound, maxval=bound)
    b = jax.random.uniform(b_key, (cout,), jnp.float32,
                           minval=-bound, maxval=bound)
    return w, b


def _reference_forward(x_nchw, params):
    """Pure-JAX reference using lax.conv for correctness checking."""
    (w1, b1), (w2, b2), (w3, b3) = params
    x = jnp.transpose(x_nchw, (0, 2, 3, 1))
    dn = ("NHWC", "HWIO", "NHWC")

    def conv(inp, w, b):
        return jax.lax.conv_general_dilated(
            inp, w, window_strides=(1, 1), padding=((PAD, PAD), (PAD, PAD)),
            dimension_numbers=dn) + b

    v1 = conv(x, w1, b1)
    v6 = jnp.maximum(conv(v1, w2, b2) + x, 0.0)
    out = conv(v6, w3, b3) + x
    return jnp.transpose(out, (0, 3, 1, 2))


if __name__ == "__main__":
    key = jax.random.PRNGKey(0)
    kx, k1, k2, k3 = jax.random.split(key, 4)

    # channels=16 fixed by the module; batch=2, spatial 8x8  (W*C = 128 lanes).
    x = jax.random.normal(kx, (2, C, 8, 8), jnp.float32)
    params = (
        _init_conv_params(k1, C, C),
        _init_conv_params(k2, C, C),
        _init_conv_params(k3, C, C),
    )

    out = jax.block_until_ready(model_forward(x, params))
    ref = jax.block_until_ready(_reference_forward(x, params))

    assert out.shape == (2, C, 8, 8)
    # Slightly relaxed vs 1e-4: the banded-weight form re-associates the 49
    # taps of each conv into 7 wide-K f32 dots.
    assert jnp.allclose(out, ref, atol=2e-4, rtol=2e-4), \
        float(jnp.max(jnp.abs(out - ref)))
    print("KERNEL_OK")
</pallas_src>

<mosaic_0001>
module attributes {stable_mosaic.version = 11 : i64} {
  func.func @_fused_model_kernel(%arg0: i32, %arg1: memref<1x8x128xf32, #tpu.memory_space<vmem>>, %arg2: memref<7x128x128xf32, #tpu.memory_space<vmem>>, %arg3: memref<1x128xf32, #tpu.memory_space<vmem>>, %arg4: memref<7x128x128xf32, #tpu.memory_space<vmem>>, %arg5: memref<1x128xf32, #tpu.memory_space<vmem>>, %arg6: memref<7x128x128xf32, #tpu.memory_space<vmem>>, %arg7: memref<1x128xf32, #tpu.memory_space<vmem>>, %arg8: memref<1x8x128xf32, #tpu.memory_space<vmem>>, %arg9: memref<14x128xf32, #tpu.memory_space<vmem>>) attributes {dimension_semantics = [#tpu.dimension_semantics<parallel>], iteration_bounds = array<i64: 2>, scalar_prefetch = 0 : i64, scratch_operands = 1 : i64, tpu.core_type = #tpu.core_type<tc>, window_params = [{transform_indices = @transform_0, window_bounds = array<i64: 1, 8, 128>}, {pipeline_mode = #tpu.pipeline_mode<synchronous>, transform_indices = @transform_1, window_bounds = array<i64: 7, 128, 128>}, {pipeline_mode = #tpu.pipeline_mode<synchronous>, transform_indices = @transform_2, window_bounds = array<i64: 1, 128>}, {pipeline_mode = #tpu.pipeline_mode<synchronous>, transform_indices = @transform_3, window_bounds = array<i64: 7, 128, 128>}, {pipeline_mode = #tpu.pipeline_mode<synchronous>, transform_indices = @transform_4, window_bounds = array<i64: 1, 128>}, {pipeline_mode = #tpu.pipeline_mode<synchronous>, transform_indices = @transform_5, window_bounds = array<i64: 7, 128, 128>}, {pipeline_mode = #tpu.pipeline_mode<synchronous>, transform_indices = @transform_6, window_bounds = array<i64: 1, 128>}, {transform_indices = @transform_7, window_bounds = array<i64: 1, 8, 128>}]} {
    %cst = arith.constant 0.000000e+00 : f32
    %0 = vector.broadcast %cst : f32 to vector<14x128xf32>
    %c0 = arith.constant 0 : index
    %c0_0 = arith.constant 0 : index
    %1 = vector.load %arg9[%c0, %c0_0] : memref<14x128xf32, #tpu.memory_space<vmem>>, vector<14x128xf32>
    tpu.vector_store %arg9[%c0, %c0_0], %0 {strides = array<i32>} : memref<14x128xf32, #tpu.memory_space<vmem>>, vector<14x128xf32>,
    %c0_1 = arith.constant 0 : index
    %c0_2 = arith.constant 0 : index
    %c0_3 = arith.constant 0 : index
    %2 = vector.load %arg1[%c0_1, %c0_2, %c0_3] : memref<1x8x128xf32, #tpu.memory_space<vmem>>, vector<1x8x128xf32>
    %3 = vector.shape_cast %2 : vector<1x8x128xf32> to vector<8x128xf32>
    %c3 = arith.constant 3 : index
    %c0_4 = arith.constant 0 : index
    %4 = vector.load %arg9[%c3, %c0_4] : memref<14x128xf32, #tpu.memory_space<vmem>>, vector<8x128xf32>
    tpu.vector_store %arg9[%c3, %c0_4], %3 {strides = array<i32>} : memref<14x128xf32, #tpu.memory_space<vmem>>, vector<8x128xf32>,
    %c0_5 = arith.constant 0 : index
    %c0_6 = arith.constant 0 : index
    %5 = vector.load %arg9[%c0_5, %c0_6] : memref<14x128xf32, #tpu.memory_space<vmem>>, vector<8x128xf32>
    %c0_7 = arith.constant 0 : index
    %c0_8 = arith.constant 0 : index
    %c0_9 = arith.constant 0 : index
    %6 = vector.load %arg2[%c0_7, %c0_8, %c0_9] : memref<7x128x128xf32, #tpu.memory_space<vmem>>, vector<1x128x128xf32>
    %7 = vector.shape_cast %6 : vector<1x128x128xf32> to vector<128x128xf32>
    %cst_10 = arith.constant dense<0.000000e+00> : vector<8x128xf32>
    %8 = tpu.matmul %5, %7, %cst_10 {dimension_numbers = #tpu.dot_dimension_numbers<[1], [0], [0], [1], [0, 0, 1, 1], [], []>} : vector<8x128xf32>, vector<128x128xf32>, vector<8x128xf32> -> vector<8x128xf32>
    %c1 = arith.constant 1 : index
    %c0_11 = arith.constant 0 : index
    %9 = vector.load %arg9[%c1, %c0_11] : memref<14x128xf32, #tpu.memory_space<vmem>>, vector<8x128xf32>
    %c1_12 = arith.constant 1 : index
    %c0_13 = arith.constant 0 : index
    %c0_14 = arith.constant 0 : index
    %10 = vector.load %arg2[%c1_12, %c0_13, %c0_14] : memref<7x128x128xf32, #tpu.memory_space<vmem>>, vector<1x128x128xf32>
    %11 = vector.shape_cast %10 : vector<1x128x128xf32> to vector<128x128xf32>
    %cst_15 = arith.constant dense<0.000000e+00> : vector<8x128xf32>
    %12 = tpu.matmul %9, %11, %cst_15 {dimension_numbers = #tpu.dot_dimension_numbers<[1], [0], [0], [1], [0, 0, 1, 1], [], []>} : vector<8x128xf32>, vector<128x128xf32>, vector<8x128xf32> -> vector<8x128xf32>
    %13 = arith.addf %8, %12 : vector<8x128xf32>
    %c2 = arith.constant 2 : index
    %c0_16 = arith.constant 0 : index
    %14 = vector.load %arg9[%c2, %c0_16] : memref<14x128xf32, #tpu.memory_space<vmem>>, vector<8x128xf32>
    %c2_17 = arith.constant 2 : index
    %c0_18 = arith.constant 0 : index
    %c0_19 = arith.constant 0 : index
    %15 = vector.load %arg2[%c2_17, %c0_18, %c0_19] : memref<7x128x128xf32, #tpu.memory_space<vmem>>, vector<1x128x128xf32>
    %16 = vector.shape_cast %15 : vector<1x128x128xf32> to vector<128x128xf32>
    %cst_20 = arith.constant dense<0.000000e+00> : vector<8x128xf32>
    %17 = tpu.matmul %14, %16, %cst_20 {dimension_numbers = #tpu.dot_dimension_numbers<[1], [0], [0], [1], [0, 0, 1, 1], [], []>} : vector<8x128xf32>, vector<128x128xf32>, vector<8x128xf32> -> vector<8x128xf32>
    %18 = arith.addf %13, %17 : vector<8x128xf32>
    %c3_21 = arith.constant 3 : index
    %c0_22 = arith.constant 0 : index
    %19 = vector.load %arg9[%c3_21, %c0_22] : memref<14x128xf32, #tpu.memory_space<vmem>>, vector<8x128xf32>
    %c3_23 = arith.constant 3 : index
    %c0_24 = arith.constant 0 : index
    %c0_25 = arith.constant 0 : index
    %20 = vector.load %arg2[%c3_23, %c0_24, %c0_25] : memref<7x128x128xf32, #tpu.memory_space<vmem>>, vector<1x128x128xf32>
    %21 = vector.shape_cast %20 : vector<1x128x128xf32> to vector<128x128xf32>
    %cst_26 = arith.constant dense<0.000000e+00> : vector<8x128xf32>
    %22 = tpu.matmul %19, %21, %cst_26 {dimension_numbers = #tpu.dot_dimension_numbers<[1], [0], [0], [1], [0, 0, 1, 1], [], []>} : vector<8x128xf32>, vector<128x128xf32>, vector<8x128xf32> -> vector<8x128xf32>
    %23 = arith.addf %18, %22 : vector<8x128xf32>
    %c4 = arith.constant 4 : index
    %c0_27 = arith.constant 0 : index
    %24 = vector.load %arg9[%c4, %c0_27] : memref<14x128xf32, #tpu.memory_space<vmem>>, vector<8x128xf32>
    %c4_28 = arith.constant 4 : index
    %c0_29 = arith.constant 0 : index
    %c0_30 = arith.constant 0 : index
    %25 = vector.load %arg2[%c4_28, %c0_29, %c0_30] : memref<7x128x128xf32, #tpu.memory_space<vmem>>, vector<1x128x128xf32>
    %26 = vector.shape_cast %25 : vector<1x128x128xf32> to vector<128x128xf32>
    %cst_31 = arith.constant dense<0.000000e+00> : vector<8x128xf32>
    %27 = tpu.matmul %24, %26, %cst_31 {dimension_numbers = #tpu.dot_dimension_numbers<[1], [0], [0], [1], [0, 0, 1, 1], [], []>} : vector<8x128xf32>, vector<128x128xf32>, vector<8x128xf32> -> vector<8x128xf32>
    %28 = arith.addf %23, %27 : vector<8x128xf32>
    %c5 = arith.constant 5 : index
    %c0_32 = arith.constant 0 : index
    %29 = vector.load %arg9[%c5, %c0_32] : memref<14x128xf32, #tpu.memory_space<vmem>>, vector<8x128xf32>
    %c5_33 = arith.constant 5 : index
    %c0_34 = arith.constant 0 : index
    %c0_35 = arith.constant 0 : index
    %30 = vector.load %arg2[%c5_33, %c0_34, %c0_35] : memref<7x128x128xf32, #tpu.memory_space<vmem>>, vector<1x128x128xf32>
    %31 = vector.shape_cast %30 : vector<1x128x128xf32> to vector<128x128xf32>
    %cst_36 = arith.constant dense<0.000000e+00> : vector<8x128xf32>
    %32 = tpu.matmul %29, %31, %cst_36 {dimension_numbers = #tpu.dot_dimension_numbers<[1], [0], [0], [1], [0, 0, 1, 1], [], []>} : vector<8x128xf32>, vector<128x128xf32>, vector<8x128xf32> -> vector<8x128xf32>
    %33 = arith.addf %28, %32 : vector<8x128xf32>
    %c6 = arith.constant 6 : index
    %c0_37 = arith.constant 0 : index
    %34 = vector.load %arg9[%c6, %c0_37] : memref<14x128xf32, #tpu.memory_space<vmem>>, vector<8x128xf32>
    %c6_38 = arith.constant 6 : index
    %c0_39 = arith.constant 0 : index
    %c0_40 = arith.constant 0 : index
    %35 = vector.load %arg2[%c6_38, %c0_39, %c0_40] : memref<7x128x128xf32, #tpu.memory_space<vmem>>, vector<1x128x128xf32>
    %36 = vector.shape_cast %35 : vector<1x128x128xf32> to vector<128x128xf32>
    %cst_41 = arith.constant dense<0.000000e+00> : vector<8x128xf32>
    %37 = tpu.matmul %34, %36, %cst_41 {dimension_numbers = #tpu.dot_dimension_numbers<[1], [0], [0], [1], [0, 0, 1, 1], [], []>} : vector<8x128xf32>, vector<128x128xf32>, vector<8x128xf32> -> vector<8x128xf32>
    %38 = arith.addf %33, %37 : vector<8x128xf32>
    %c0_42 = arith.constant 0 : index
    %c0_43 = arith.constant 0 : index
    %39 = vector.load %arg3[%c0_42, %c0_43] : memref<1x128xf32, #tpu.memory_space<vmem>>, vector<1x128xf32>
    %40 = vector.broadcast %39 : vector<1x128xf32> to vector<8x128xf32>
    %41 = arith.addf %38, %40 : vector<8x128xf32>
    %c3_44 = arith.constant 3 : index
    %c0_45 = arith.constant 0 : index
    %42 = vector.load %arg9[%c3_44, %c0_45] : memref<14x128xf32, #tpu.memory_space<vmem>>, vector<8x128xf32>
    tpu.vector_store %arg9[%c3_44, %c0_45], %41 {strides = array<i32>} : memref<14x128xf32, #tpu.memory_space<vmem>>, vector<8x128xf32>,
    %c0_46 = arith.constant 0 : index
    %c0_47 = arith.constant 0 : index
    %43 = vector.load %arg9[%c0_46, %c0_47] : memref<14x128xf32, #tpu.memory_space<vmem>>, vector<8x128xf32>
    %c0_48 = arith.constant 0 : index
    %c0_49 = arith.constant 0 : index
    %c0_50 = arith.constant 0 : index
    %44 = vector.load %arg4[%c0_48, %c0_49, %c0_50] : memref<7x128x128xf32, #tpu.memory_space<vmem>>, vector<1x128x128xf32>
    %45 = vector.shape_cast %44 : vector<1x128x128xf32> to vector<128x128xf32>
    %cst_51 = arith.constant dense<0.000000e+00> : vector<8x128xf32>
    %46 = tpu.matmul %43, %45, %cst_51 {dimension_numbers = #tpu.dot_dimension_numbers<[1], [0], [0], [1], [0, 0, 1, 1], [], []>} : vector<8x128xf32>, vector<128x128xf32>, vector<8x128xf32> -> vector<8x128xf32>
    %c1_52 = arith.constant 1 : index
    %c0_53 = arith.constant 0 : index
    %47 = vector.load %arg9[%c1_52, %c0_53] : memref<14x128xf32, #tpu.memory_space<vmem>>, vector<8x128xf32>
    %c1_54 = arith.constant 1 : index
    %c0_55 = arith.constant 0 : index
    %c0_56 = arith.constant 0 : index
    %48 = vector.load %arg4[%c1_54, %c0_55, %c0_56] : memref<7x128x128xf32, #tpu.memory_space<vmem>>, vector<1x128x128xf32>
    %49 = vector.shape_cast %48 : vector<1x128x128xf32> to vector<128x128xf32>
    %cst_57 = arith.constant dense<0.000000e+00> : vector<8x128xf32>
    %50 = tpu.matmul %47, %49, %cst_57 {dimension_numbers = #tpu.dot_dimension_numbers<[1], [0], [0], [1], [0, 0, 1, 1], [], []>} : vector<8x128xf32>, vector<128x128xf32>, vector<8x128xf32> -> vector<8x128xf32>
    %51 = arith.addf %46, %50 : vector<8x128xf32>
    %c2_58 = arith.constant 2 : index
    %c0_59 = arith.constant 0 : index
    %52 = vector.load %arg9[%c2_58, %c0_59] : memref<14x128xf32, #tpu.memory_space<vmem>>, vector<8x128xf32>
    %c2_60 = arith.constant 2 : index
    %c0_61 = arith.constant 0 : index
    %c0_62 = arith.constant 0 : index
    %53 = vector.load %arg4[%c2_60, %c0_61, %c0_62] : memref<7x128x128xf32, #tpu.memory_space<vmem>>, vector<1x128x128xf32>
    %54 = vector.shape_cast %53 : vector<1x128x128xf32> to vector<128x128xf32>
    %cst_63 = arith.constant dense<0.000000e+00> : vector<8x128xf32>
    %55 = tpu.matmul %52, %54, %cst_63 {dimension_numbers = #tpu.dot_dimension_numbers<[1], [0], [0], [1], [0, 0, 1, 1], [], []>} : vector<8x128xf32>, vector<128x128xf32>, vector<8x128xf32> -> vector<8x128xf32>
    %56 = arith.addf %51, %55 : vector<8x128xf32>
    %c3_64 = arith.constant 3 : index
    %c0_65 = arith.constant 0 : index
    %57 = vector.load %arg9[%c3_64, %c0_65] : memref<14x128xf32, #tpu.memory_space<vmem>>, vector<8x128xf32>
    %c3_66 = arith.constant 3 : index
    %c0_67 = arith.constant 0 : index
    %c0_68 = arith.constant 0 : index
    %58 = vector.load %arg4[%c3_66, %c0_67, %c0_68] : memref<7x128x128xf32, #tpu.memory_space<vmem>>, vector<1x128x128xf32>
    %59 = vector.shape_cast %58 : vector<1x128x128xf32> to vector<128x128xf32>
    %cst_69 = arith.constant dense<0.000000e+00> : vector<8x128xf32>
    %60 = tpu.matmul %57, %59, %cst_69 {dimension_numbers = #tpu.dot_dimension_numbers<[1], [0], [0], [1], [0, 0, 1, 1], [], []>} : vector<8x128xf32>, vector<128x128xf32>, vector<8x128xf32> -> vector<8x128xf32>
    %61 = arith.addf %56, %60 : vector<8x128xf32>
    %c4_70 = arith.constant 4 : index
    %c0_71 = arith.constant 0 : index
    %62 = vector.load %arg9[%c4_70, %c0_71] : memref<14x128xf32, #tpu.memory_space<vmem>>, vector<8x128xf32>
    %c4_72 = arith.constant 4 : index
    %c0_73 = arith.constant 0 : index
    %c0_74 = arith.constant 0 : index
    %63 = vector.load %arg4[%c4_72, %c0_73, %c0_74] : memref<7x128x128xf32, #tpu.memory_space<vmem>>, vector<1x128x128xf32>
    %64 = vector.shape_cast %63 : vector<1x128x128xf32> to vector<128x128xf32>
    %cst_75 = arith.constant dense<0.000000e+00> : vector<8x128xf32>
    %65 = tpu.matmul %62, %64, %cst_75 {dimension_numbers = #tpu.dot_dimension_numbers<[1], [0], [0], [1], [0, 0, 1, 1], [], []>} : vector<8x128xf32>, vector<128x128xf32>, vector<8x128xf32> -> vector<8x128xf32>
    %66 = arith.addf %61, %65 : vector<8x128xf32>
    %c5_76 = arith.constant 5 : index
    %c0_77 = arith.constant 0 : index
    %67 = vector.load %arg9[%c5_76, %c0_77] : memref<14x128xf32, #tpu.memory_space<vmem>>, vector<8x128xf32>
    %c5_78 = arith.constant 5 : index
    %c0_79 = arith.constant 0 : index
    %c0_80 = arith.constant 0 : index
    %68 = vector.load %arg4[%c5_78, %c0_79, %c0_80] : memref<7x128x128xf32, #tpu.memory_space<vmem>>, vector<1x128x128xf32>
    %69 = vector.shape_cast %68 : vector<1x128x128xf32> to vector<128x128xf32>
    %cst_81 = arith.constant dense<0.000000e+00> : vector<8x128xf32>
    %70 = tpu.matmul %67, %69, %cst_81 {dimension_numbers = #tpu.dot_dimension_numbers<[1], [0], [0], [1], [0, 0, 1, 1], [], []>} : vector<8x128xf32>, vector<128x128xf32>, vector<8x128xf32> -> vector<8x128xf32>
    %71 = arith.addf %66, %70 : vector<8x128xf32>
    %c6_82 = arith.constant 6 : index
    %c0_83 = arith.constant 0 : index
    %72 = vector.load %arg9[%c6_82, %c0_83] : memref<14x128xf32, #tpu.memory_space<vmem>>, vector<8x128xf32>
    %c6_84 = arith.constant 6 : index
    %c0_85 = arith.constant 0 : index
    %c0_86 = arith.constant 0 : index
    %73 = vector.load %arg4[%c6_84, %c0_85, %c0_86] : memref<7x128x128xf32, #tpu.memory_space<vmem>>, vector<1x128x128xf32>
    %74 = vector.shape_cast %73 : vector<1x128x128xf32> to vector<128x128xf32>
    %cst_87 = arith.constant dense<0.000000e+00> : vector<8x128xf32>
    %75 = tpu.matmul %72, %74, %cst_87 {dimension_numbers = #tpu.dot_dimension_numbers<[1], [0], [0], [1], [0, 0, 1, 1], [], []>} : vector<8x128xf32>, vector<128x128xf32>, vector<8x128xf32> -> vector<8x128xf32>
    %76 = arith.addf %71, %75 : vector<8x128xf32>
    %c0_88 = arith.constant 0 : index
    %c0_89 = arith.constant 0 : index
    %77 = vector.load %arg5[%c0_88, %c0_89] : memref<1x128xf32, #tpu.memory_space<vmem>>, vector<1x128xf32>
    %78 = vector.broadcast %77 : vector<1x128xf32> to vector<8x128xf32>
    %79 = arith.addf %76, %78 : vector<8x128xf32>
    %80 = arith.addf %79, %3 : vector<8x128xf32>
    %cst_90 = arith.constant 0.000000e+00 : f32
    %81 = vector.broadcast %cst_90 : f32 to vector<8x128xf32>
    %82 = arith.maximumf %80, %81 : vector<8x128xf32>
    %c3_91 = arith.constant 3 : index
    %c0_92 = arith.constant 0 : index
    %83 = vector.load %arg9[%c3_91, %c0_92] : memref<14x128xf32, #tpu.memory_space<vmem>>, vector<8x128xf32>
    tpu.vector_store %arg9[%c3_91, %c0_92], %82 {strides = array<i32>} : memref<14x128xf32, #tpu.memory_space<vmem>>, vector<8x128xf32>,
    %c0_93 = arith.constant 0 : index
    %c0_94 = arith.constant 0 : index
    %84 = vector.load %arg9[%c0_93, %c0_94] : memref<14x128xf32, #tpu.memory_space<vmem>>, vector<8x128xf32>
    %c0_95 = arith.constant 0 : index
    %c0_96 = arith.constant 0 : index
    %c0_97 = arith.constant 0 : index
    %85 = vector.load %arg6[%c0_95, %c0_96, %c0_97] : memref<7x128x128xf32, #tpu.memory_space<vmem>>, vector<1x128x128xf32>
    %86 = vector.shape_cast %85 : vector<1x128x128xf32> to vector<128x128xf32>
    %cst_98 = arith.constant dense<0.000000e+00> : vector<8x128xf32>
    %87 = tpu.matmul %84, %86, %cst_98 {dimension_numbers = #tpu.dot_dimension_numbers<[1], [0], [0], [1], [0, 0, 1, 1], [], []>} : vector<8x128xf32>, vector<128x128xf32>, vector<8x128xf32> -> vector<8x128xf32>
    %c1_99 = arith.constant 1 : index
    %c0_100 = arith.constant 0 : index
    %88 = vector.load %arg9[%c1_99, %c0_100] : memref<14x128xf32, #tpu.memory_space<vmem>>, vector<8x128xf32>
    %c1_101 = arith.constant 1 : index
    %c0_102 = arith.constant 0 : index
    %c0_103 = arith.constant 0 : index
    %89 = vector.load %arg6[%c1_101, %c0_102, %c0_103] : memref<7x128x128xf32, #tpu.memory_space<vmem>>, vector<1x128x128xf32>
    %90 = vector.shape_cast %89 : vector<1x128x128xf32> to vector<128x128xf32>
    %cst_104 = arith.constant dense<0.000000e+00> : vector<8x128xf32>
    %91 = tpu.matmul %88, %90, %cst_104 {dimension_numbers = #tpu.dot_dimension_numbers<[1], [0], [0], [1], [0, 0, 1, 1], [], []>} : vector<8x128xf32>, vector<128x128xf32>, vector<8x128xf32> -> vector<8x128xf32>
    %92 = arith.addf %87, %91 : vector<8x128xf32>
    %c2_105 = arith.constant 2 : index
    %c0_106 = arith.constant 0 : index
    %93 = vector.load %arg9[%c2_105, %c0_106] : memref<14x128xf32, #tpu.memory_space<vmem>>, vector<8x128xf32>
    %c2_107 = arith.constant 2 : index
    %c0_108 = arith.constant 0 : index
    %c0_109 = arith.constant 0 : index
    %94 = vector.load %arg6[%c2_107, %c0_108, %c0_109] : memref<7x128x128xf32, #tpu.memory_space<vmem>>, vector<1x128x128xf32>
    %95 = vector.shape_cast %94 : vector<1x128x128xf32> to vector<128x128xf32>
    %cst_110 = arith.constant dense<0.000000e+00> : vector<8x128xf32>
    %96 = tpu.matmul %93, %95, %cst_110 {dimension_numbers = #tpu.dot_dimension_numbers<[1], [0], [0], [1], [0, 0, 1, 1], [], []>} : vector<8x128xf32>, vector<128x128xf32>, vector<8x128xf32> -> vector<8x128xf32>
    %97 = arith.addf %92, %96 : vector<8x128xf32>
    %c3_111 = arith.constant 3 : index
    %c0_112 = arith.constant 0 : index
    %98 = vector.load %arg9[%c3_111, %c0_112] : memref<14x128xf32, #tpu.memory_space<vmem>>, vector<8x128xf32>
    %c3_113 = arith.constant 3 : index
    %c0_114 = arith.constant 0 : index
    %c0_115 = arith.constant 0 : index
    %99 = vector.load %arg6[%c3_113, %c0_114, %c0_115] : memref<7x128x128xf32, #tpu.memory_space<vmem>>, vector<1x128x128xf32>
    %100 = vector.shape_cast %99 : vector<1x128x128xf32> to vector<128x128xf32>
    %cst_116 = arith.constant dense<0.000000e+00> : vector<8x128xf32>
    %101 = tpu.matmul %98, %100, %cst_116 {dimension_numbers = #tpu.dot_dimension_numbers<[1], [0], [0], [1], [0, 0, 1, 1], [], []>} : vector<8x128xf32>, vector<128x128xf32>, vector<8x128xf32> -> vector<8x128xf32>
    %102 = arith.addf %97, %101 : vector<8x128xf32>
    %c4_117 = arith.constant 4 : index
    %c0_118 = arith.constant 0 : index
    %103 = vector.load %arg9[%c4_117, %c0_118] : memref<14x128xf32, #tpu.memory_space<vmem>>, vector<8x128xf32>
    %c4_119 = arith.constant 4 : index
    %c0_120 = arith.constant 0 : index
    %c0_121 = arith.constant 0 : index
    %104 = vector.load %arg6[%c4_119, %c0_120, %c0_121] : memref<7x128x128xf32, #tpu.memory_space<vmem>>, vector<1x128x128xf32>
    %105 = vector.shape_cast %104 : vector<1x128x128xf32> to vector<128x128xf32>
    %cst_122 = arith.constant dense<0.000000e+00> : vector<8x128xf32>
    %106 = tpu.matmul %103, %105, %cst_122 {dimension_numbers = #tpu.dot_dimension_numbers<[1], [0], [0], [1], [0, 0, 1, 1], [], []>} : vector<8x128xf32>, vector<128x128xf32>, vector<8x128xf32> -> vector<8x128xf32>
    %107 = arith.addf %102, %106 : vector<8x128xf32>
    %c5_123 = arith.constant 5 : index
    %c0_124 = arith.constant 0 : index
    %108 = vector.load %arg9[%c5_123, %c0_124] : memref<14x128xf32, #tpu.memory_space<vmem>>, vector<8x128xf32>
    %c5_125 = arith.constant 5 : index
    %c0_126 = arith.constant 0 : index
    %c0_127 = arith.constant 0 : index
    %109 = vector.load %arg6[%c5_125, %c0_126, %c0_127] : memref<7x128x128xf32, #tpu.memory_space<vmem>>, vector<1x128x128xf32>
    %110 = vector.shape_cast %109 : vector<1x128x128xf32> to vector<128x128xf32>
    %cst_128 = arith.constant dense<0.000000e+00> : vector<8x128xf32>
    %111 = tpu.matmul %108, %110, %cst_128 {dimension_numbers = #tpu.dot_dimension_numbers<[1], [0], [0], [1], [0, 0, 1, 1], [], []>} : vector<8x128xf32>, vector<128x128xf32>, vector<8x128xf32> -> vector<8x128xf32>
    %112 = arith.addf %107, %111 : vector<8x128xf32>
    %c6_129 = arith.constant 6 : index
    %c0_130 = arith.constant 0 : index
    %113 = vector.load %arg9[%c6_129, %c0_130] : memref<14x128xf32, #tpu.memory_space<vmem>>, vector<8x128xf32>
    %c6_131 = arith.constant 6 : index
    %c0_132 = arith.constant 0 : index
    %c0_133 = arith.constant 0 : index
    %114 = vector.load %arg6[%c6_131, %c0_132, %c0_133] : memref<7x128x128xf32, #tpu.memory_space<vmem>>, vector<1x128x128xf32>
    %115 = vector.shape_cast %114 : vector<1x128x128xf32> to vector<128x128xf32>
    %cst_134 = arith.constant dense<0.000000e+00> : vector<8x128xf32>
    %116 = tpu.matmul %113, %115, %cst_134 {dimension_numbers = #tpu.dot_dimension_numbers<[1], [0], [0], [1], [0, 0, 1, 1], [], []>} : vector<8x128xf32>, vector<128x128xf32>, vector<8x128xf32> -> vector<8x128xf32>
    %117 = arith.addf %112, %116 : vector<8x128xf32>
    %c0_135 = arith.constant 0 : index
    %c0_136 = arith.constant 0 : index
    %118 = vector.load %arg7[%c0_135, %c0_136] : memref<1x128xf32, #tpu.memory_space<vmem>>, vector<1x128xf32>
    %119 = vector.broadcast %118 : vector<1x128xf32> to vector<8x128xf32>
    %120 = arith.addf %117, %119 : vector<8x128xf32>
    %121 = arith.addf %120, %3 : vector<8x128xf32>
    %c0_137 = arith.constant 0 : index
    %c0_138 = arith.constant 0 : index
    %c0_139 = arith.constant 0 : index
    %122 = vector.load %arg8[%c0_137, %c0_138, %c0_139] : memref<1x8x128xf32, #tpu.memory_space<vmem>>, vector<1x8x128xf32>
    %123 = vector.shape_cast %122 : vector<1x8x128xf32> to vector<8x128xf32>
    %124 = vector.shape_cast %121 : vector<8x128xf32> to vector<1x8x128xf32>
    tpu.vector_store %arg8[%c0_137, %c0_138, %c0_139], %124 {strides = array<i32>} : memref<1x8x128xf32, #tpu.memory_space<vmem>>, vector<1x8x128xf32>,
    return
  }
  func.func @transform_0(%arg0: i32) -> (i32, i32, i32) {
    %c0_i32 = arith.constant 0 : i32
    %c0_i32_0 = arith.constant 0 : i32
    %c0_i32_1 = arith.constant 0 : i32
    return %arg0, %c0_i32, %c0_i32_0 : i32, i32, i32
  }
  func.func @transform_1(%arg0: i32) -> (i32, i32, i32) {
    %c0_i32 = arith.constant 0 : i32
    %c0_i32_0 = arith.constant 0 : i32
    %c0_i32_1 = arith.constant 0 : i32
    %c0_i32_2 = arith.constant 0 : i32
    return %c0_i32, %c0_i32_0, %c0_i32_1 : i32, i32, i32
  }
  func.func @transform_2(%arg0: i32) -> (i32, i32) {
    %c0_i32 = arith.constant 0 : i32
    %c0_i32_0 = arith.constant 0 : i32
    %c0_i32_1 = arith.constant 0 : i32
    return %c0_i32, %c0_i32_0 : i32, i32
  }
  func.func @transform_3(%arg0: i32) -> (i32, i32, i32) {
    %c0_i32 = arith.constant 0 : i32
    %c0_i32_0 = arith.constant 0 : i32
    %c0_i32_1 = arith.constant 0 : i32
    %c0_i32_2 = arith.constant 0 : i32
    return %c0_i32, %c0_i32_0, %c0_i32_1 : i32, i32, i32
  }
  func.func @transform_4(%arg0: i32) -> (i32, i32) {
    %c0_i32 = arith.constant 0 : i32
    %c0_i32_0 = arith.constant 0 : i32
    %c0_i32_1 = arith.constant 0 : i32
    return %c0_i32, %c0_i32_0 : i32, i32
  }
  func.func @transform_5(%arg0: i32) -> (i32, i32, i32) {
    %c0_i32 = arith.constant 0 : i32
    %c0_i32_0 = arith.constant 0 : i32
    %c0_i32_1 = arith.constant 0 : i32
    %c0_i32_2 = arith.constant 0 : i32
    return %c0_i32, %c0_i32_0, %c0_i32_1 : i32, i32, i32
  }
  func.func @transform_6(%arg0: i32) -> (i32, i32) {
    %c0_i32 = arith.constant 0 : i32
    %c0_i32_0 = arith.constant 0 : i32
    %c0_i32_1 = arith.constant 0 : i32
    return %c0_i32, %c0_i32_0 : i32, i32
  }
  func.func @transform_7(%arg0: i32) -> (i32, i32, i32) {
    %c0_i32 = arith.constant 0 : i32
    %c0_i32_0 = arith.constant 0 : i32
    %c0_i32_1 = arith.constant 0 : i32
    return %arg0, %c0_i32, %c0_i32_0 : i32, i32, i32
  }
}

</mosaic_0001>

<llo_original>
// kernel: tile.18
$region0: #{tile.18}
  #allocation0 [shape = 's32[1]{0}', space=sflag, size = 0x4, scoped, tag = 'scoped memory for tile.18']
  %s0 = inlined_call_operand.vmem [shape: f32[16], index: 0, kind: input, shape index: {}]
  %s1 = inlined_call_operand.vmem [shape: f32[8,16], index: 1, kind: output, shape index: {}]
  // Predicated region
  $region2: #{tile.18} parent=0 // pred_check
    _
  $region3: #{tile.18} parent=0 // pred_check_branch
    %3 = sbr.rel (0) target = $region5
  $region4: #{tile.18} parent=0 // pred_region
    _
  $region5: #{tile.18} parent=0 // pred_fallthru
    _
  %v4 = vld [vmem:[%s0] ss:$0 sm:$0xff]
  %5 = vst [vmem:[%s1] sm:$0xff] %v4

// kernel: tile.19
$region0: #{tile.19}
  %s0 = inlined_call_operand.vmem [shape: f32[8,16], index: 0, kind: input, shape index: {}]
  %s1 = inlined_call_operand.vmem [shape: f32[1,128], index: 1, kind: output, shape index: {}]
  $region1: #{tile.19} parent=0
    #allocation0 [shape = 'u8[4096]{0}', space=vmem, size = 0x1000, scoped, tag = 'scoped mem for output reshape']
    %v2 = vld [vmem:[%s0] sm:$0x1]
    %vm3 = vcmask 130048
    %4 = vst.msk [vmem:[#allocation0] sm:$0x1] %vm3, %v2
    %s5 = scalar_lea.vmem %s0, 7
    %v6 = vld [vmem:[%s5] sm:$0x1]
    %7 = vrot.lane.b32.xlu0 %v6, 112
    %v8 = vpop.permute.xlu0 %7
    %vm9 = vcmask 1048448
    %10 = vst.msk [vmem:[#allocation0] sm:$0x1] %vm9, %v8
    %s11 = scalar_lea.vmem %s0, 6
    %v12 = vld [vmem:[%s11] sm:$0x1]
    %13 = vrot.lane.b32.xlu0 %v12, 96
    %v14 = vpop.permute.xlu0 %13
    %vm15 = vcmask 917248
    %16 = vst.msk [vmem:[#allocation0] sm:$0x1] %vm15, %v14
    %s17 = scalar_lea.vmem %s0, 5
    %v18 = vld [vmem:[%s17] sm:$0x1]
    %19 = vrot.lane.b32.xlu0 %v18, 80
    %v20 = vpop.permute.xlu0 %19
    %vm21 = vcmask 786048
    %22 = vst.msk [vmem:[#allocation0] sm:$0x1] %vm21, %v20
    %s23 = scalar_lea.vmem %s0, 4
    %v24 = vld [vmem:[%s23] sm:$0x1]
    %25 = vrot.lane.b32.xlu0 %v24, 64
    %v26 = vpop.permute.xlu0 %25
    %vm27 = vcmask 654848
    %28 = vst.msk [vmem:[#allocation0] sm:$0x1] %vm27, %v26
    %s29 = scalar_lea.vmem %s0, 3
    %v30 = vld [vmem:[%s29] sm:$0x1]
    %31 = vrot.lane.b32.xlu0 %v30, 48
    %v32 = vpop.permute.xlu0 %31
    %vm33 = vcmask 523648
    %34 = vst.msk [vmem:[#allocation0] sm:$0x1] %vm33, %v32
    %s35 = scalar_lea.vmem %s0, 2
    %v36 = vld [vmem:[%s35] sm:$0x1]
    %37 = vrot.lane.b32.xlu0 %v36, 32
    %v38 = vpop.permute.xlu0 %37
    %vm39 = vcmask 392448
    %40 = vst.msk [vmem:[#allocation0] sm:$0x1] %vm39, %v38
    %s41 = scalar_lea.vmem %s0, 1
    %v42 = vld [vmem:[%s41] sm:$0x1]
    %43 = vrot.lane.b32.xlu0 %v42, 16
    %v44 = vpop.permute.xlu0 %43
    %vm45 = vcmask 261248
    %46 = vst.msk [vmem:[#allocation0] sm:$0x1] %vm45, %v44
    %s48 = ssub.s32 2, 1
    %v49 = vld [vmem:[#allocation0] sm:%s48]
    %s51 = ssub.s32 2, 1
    %52 = vst [vmem:[%s1] sm:%s51] %v49

// kernel: model_forward.1
$region0: #{model_forward.1}
  #allocation0 [shape = 'u32[]', space=smem, size = 0x4, offset = 0x4, fixed_abs, tag = 'smem constant byte address 0x4 - core index']
  #allocation1 [shape = 'u32[72,128]{1,0:T(1,128)}', space=vmem, size = 0x9000, scoped, tag = 'internal scratch']
  #allocation2 [shape = 'f32[14,128]{1,0:T(8,128)}', space=vmem, size = 0x2000, scoped, tag = 'scratch operand']
  %s0 = inlined_call_operand.vmem [shape: f32[2,8,128], index: 0, kind: input, shape index: {}]
  %s1 = inlined_call_operand.vmem [shape: f32[7,128,128], index: 1, kind: input, shape index: {}]
  %s2 = inlined_call_operand.vmem [shape: f32[1,128], index: 2, kind: input, shape index: {}]
  %s3 = inlined_call_operand.vmem [shape: f32[7,128,128], index: 3, kind: input, shape index: {}]
  %s4 = inlined_call_operand.vmem [shape: f32[1,128], index: 4, kind: input, shape index: {}]
  %s5 = inlined_call_operand.vmem [shape: f32[7,128,128], index: 5, kind: input, shape index: {}]
  %s6 = inlined_call_operand.vmem [shape: f32[1,128], index: 6, kind: input, shape index: {}]
  %s7 = inlined_call_operand.vmem [shape: f32[2,8,128], index: 7, kind: output, shape index: {}]
  %s8 = sld [smem:[#allocation0]]
  $region61: #{model_forward.1} parent=0
    _
  %s10 = ssub.s32 1, %s8
  %s11 = scalar_select 0, %s10, %s8
  loop: start=0, step=1, limit=4
  $region2: #{model_forward.1} parent=0 // loop_pre_header
    _
  $region3: #{model_forward.1} parent=0 // loop_header
    %s13 = sphi 0, %s17
    %p14 = scmp.ge.s32.totalorder %s13, 4
    %s23 = sphi 0, %s25
    %s26 = sphi 0, %s23
    %s27 = sphi 0, %s26
    %s43 = sphi 0, %s27
    %s47 = sphi 0, %s47
    %s49 = sphi 0, %s47
    %s50 = sphi 0, %s49
    %s64 = sphi 0, %s50
    %s68 = sphi 0, %s68
    %s70 = sphi 0, %s68
    %s71 = sphi 0, %s70
    %s85 = sphi 0, %s71
    %s89 = sphi 0, %s89
    %s91 = sphi 0, %s89
    %s92 = sphi 0, %s91
    %s106 = sphi 0, %s92
    %s110 = sphi 0, %s110
    %s112 = sphi 0, %s110
    %s113 = sphi 0, %s112
    %s127 = sphi 0, %s113
    %s131 = sphi 0, %s131
    %s133 = sphi 0, %s131
    %s134 = sphi 0, %s133
    %s148 = sphi 0, %s134
    %s152 = sphi 0, %s152
    %s154 = sphi 0, %s152
    %s155 = sphi 0, %s154
    %s169 = sphi 0, %s155
    %s175 = sphi 0, %s177
    %s178 = sphi 0, %s175
    %s179 = sphi 0, %s178
    %s195 = sphi 0, %s179
  $region4: #{model_forward.1} parent=0 // loop_header_branch
    %16 = sbr.rel (%p14) target = $region8
  $region5: #{model_forward.1} parent=0 // loop_body
    %s18 = ssub.s32 %s13, 1
    %s19 = ssub.s32 %s13, 2
    %s20 = sadd.s32 %s13, 1
    %s21 = ssub.s32 %s13, %s20
    %p22 = scmp.eq.s32.totalorder %s21, 0
    %s24 = sadd.s32 %s23, 1
    %s25 = scalar_select %p22, %s23, %s24
    %p28 = pneg %p22
    %p29 = scmp.eq.s32.totalorder %s13, 1
    %p30 = por %p28, %p29
    %p31 = scmp.ne.s32.totalorder %s23, %s26
    %p32 = scmp.eq.s32.totalorder %s13, 0
    %p33 = por %p31, %p32
    %p34 = scmp.ne.s32.totalorder %s23, %s26
    %p35 = scmp.eq.s32.totalorder %s18, 1
    %p36 = por %p34, %p35
    %p37 = scmp.ne.s32.totalorder %s26, %s27
    %p38 = scmp.eq.s32.totalorder %s18, 0
    %p39 = por %p37, %p38
    %p40 = scmp.ne.s32.totalorder %s26, %s27
    %p41 = scmp.eq.s32.totalorder %s19, 1
    %p42 = por %p40, %p41
    %p44 = scmp.ne.s32.totalorder %s27, %s43
    %p45 = scmp.eq.s32.totalorder %s19, 0
    %p46 = por %p44, %p45
    %s48 = sadd.s32 %s47, 1
    %p51 = scmp.eq.s32.totalorder %s13, 1
    %p52 = scmp.ne.s32.totalorder %s47, %s49
    %p53 = scmp.eq.s32.totalorder %s13, 0
    %p54 = por %p52, %p53
    %p55 = scmp.ne.s32.totalorder %s47, %s49
    %p56 = scmp.eq.s32.totalorder %s18, 1
    %p57 = por %p55, %p56
    %p58 = scmp.ne.s32.totalorder %s49, %s50
    %p59 = scmp.eq.s32.totalorder %s18, 0
    %p60 = por %p58, %p59
    %p61 = scmp.ne.s32.totalorder %s49, %s50
    %p62 = scmp.eq.s32.totalorder %s19, 1
    %p63 = por %p61, %p62
    %p65 = scmp.ne.s32.totalorder %s50, %s64
    %p66 = scmp.eq.s32.totalorder %s19, 0
    %p67 = por %p65, %p66
    %s69 = sadd.s32 %s68, 1
    %p72 = scmp.eq.s32.totalorder %s13, 1
    %p73 = scmp.ne.s32.totalorder %s68, %s70
    %p74 = scmp.eq.s32.totalorder %s13, 0
    %p75 = por %p73, %p74
    %p76 = scmp.ne.s32.totalorder %s68, %s70
    %p77 = scmp.eq.s32.totalorder %s18, 1
    %p78 = por %p76, %p77
    %p79 = scmp.ne.s32.totalorder %s70, %s71
    %p80 = scmp.eq.s32.totalorder %s18, 0
    %p81 = por %p79, %p80
    %p82 = scmp.ne.s32.totalorder %s70, %s71
    %p83 = scmp.eq.s32.totalorder %s19, 1
    %p84 = por %p82, %p83
    %p86 = scmp.ne.s32.totalorder %s71, %s85
    %p87 = scmp.eq.s32.totalorder %s19, 0
    %p88 = por %p86, %p87
    %s90 = sadd.s32 %s89, 1
    %p93 = scmp.eq.s32.totalorder %s13, 1
    %p94 = scmp.ne.s32.totalorder %s89, %s91
    %p95 = scmp.eq.s32.totalorder %s13, 0
    %p96 = por %p94, %p95
    %p97 = scmp.ne.s32.totalorder %s89, %s91
    %p98 = scmp.eq.s32.totalorder %s18, 1
    %p99 = por %p97, %p98
    %p100 = scmp.ne.s32.totalorder %s91, %s92
    %p101 = scmp.eq.s32.totalorder %s18, 0
    %p102 = por %p100, %p101
    %p103 = scmp.ne.s32.totalorder %s91, %s92
    %p104 = scmp.eq.s32.totalorder %s19, 1
    %p105 = por %p103, %p104
    %p107 = scmp.ne.s32.totalorder %s92, %s106
    %p108 = scmp.eq.s32.totalorder %s19, 0
    %p109 = por %p107, %p108
    %s111 = sadd.s32 %s110, 1
    %p114 = scmp.eq.s32.totalorder %s13, 1
    %p115 = scmp.ne.s32.totalorder %s110, %s112
    %p116 = scmp.eq.s32.totalorder %s13, 0
    %p117 = por %p115, %p116
    %p118 = scmp.ne.s32.totalorder %s110, %s112
    %p119 = scmp.eq.s32.totalorder %s18, 1
    %p120 = por %p118, %p119
    %p121 = scmp.ne.s32.totalorder %s112, %s113
    %p122 = scmp.eq.s32.totalorder %s18, 0
    %p123 = por %p121, %p122
    %p124 = scmp.ne.s32.totalorder %s112, %s113
    %p125 = scmp.eq.s32.totalorder %s19, 1
    %p126 = por %p124, %p125
    %p128 = scmp.ne.s32.totalorder %s113, %s127
    %p129 = scmp.eq.s32.totalorder %s19, 0
    %p130 = por %p128, %p129
    %s132 = sadd.s32 %s131, 1
    %p135 = scmp.eq.s32.totalorder %s13, 1
    %p136 = scmp.ne.s32.totalorder %s131, %s133
    %p137 = scmp.eq.s32.totalorder %s13, 0
    %p138 = por %p136, %p137
    %p139 = scmp.ne.s32.totalorder %s131, %s133
    %p140 = scmp.eq.s32.totalorder %s18, 1
    %p141 = por %p139, %p140
    %p142 = scmp.ne.s32.totalorder %s133, %s134
    %p143 = scmp.eq.s32.totalorder %s18, 0
    %p144 = por %p142, %p143
    %p145 = scmp.ne.s32.totalorder %s133, %s134
    %p146 = scmp.eq.s32.totalorder %s19, 1
    %p147 = por %p145, %p146
    %p149 = scmp.ne.s32.totalorder %s134, %s148
    %p150 = scmp.eq.s32.totalorder %s19, 0
    %p151 = por %p149, %p150
    %s153 = sadd.s32 %s152, 1
    %p156 = scmp.eq.s32.totalorder %s13, 1
    %p157 = scmp.ne.s32.totalorder %s152, %s154
    %p158 = scmp.eq.s32.totalorder %s13, 0
    %p159 = por %p157, %p158
    %p160 = scmp.ne.s32.totalorder %s152, %s154
    %p161 = scmp.eq.s32.totalorder %s18, 1
    %p162 = por %p160, %p161
    %p163 = scmp.ne.s32.totalorder %s154, %s155
    %p164 = scmp.eq.s32.totalorder %s18, 0
    %p165 = por %p163, %p164
    %p166 = scmp.ne.s32.totalorder %s154, %s155
    %p167 = scmp.eq.s32.totalorder %s19, 1
    %p168 = por %p166, %p167
    %p170 = scmp.ne.s32.totalorder %s155, %s169
    %p171 = scmp.eq.s32.totalorder %s19, 0
    %p172 = por %p170, %p171
    %s173 = ssub.s32 %s13, %s20
    %p174 = scmp.eq.s32.totalorder %s173, 0
    %s176 = sadd.s32 %s175, 1
    %s177 = scalar_select %p174, %s175, %s176
    %p180 = pneg %p174
    %p181 = scmp.eq.s32.totalorder %s13, 1
    %p182 = por %p180, %p181
    %p183 = scmp.ne.s32.totalorder %s175, %s178
    %p184 = scmp.eq.s32.totalorder %s13, 0
    %p185 = por %p183, %p184
    %p186 = scmp.ne.s32.totalorder %s175, %s178
    %p187 = scmp.eq.s32.totalorder %s18, 1
    %p188 = por %p186, %p187
    %p189 = scmp.ne.s32.totalorder %s178, %s179
    %p190 = scmp.eq.s32.totalorder %s18, 0
    %p191 = por %p189, %p190
    %p192 = scmp.ne.s32.totalorder %s178, %s179
    %p193 = scmp.eq.s32.totalorder %s19, 1
    %p194 = por %p192, %p193
    %p196 = scmp.ne.s32.totalorder %s179, %s195
    %p197 = scmp.eq.s32.totalorder %s19, 0
    %p198 = por %p196, %p197
    %p199 = scmp.le.s32.totalorder 1, %s13
    %p200 = scmp.lt.s32.totalorder %s13, 3
    %p201 = pnand %p199, %p200
    %p202 = pneg %p201
    // Predicated region
    $region9: #{model_forward.1} parent=5 // pred_check
      _
    $region10: #{model_forward.1} parent=5 // pred_check_branch
      %204 = sbr.rel (%p201) target = $region12
    $region11: #{model_forward.1} parent=5 // pred_region
      %s205 = ssub.s32 %s13, 1
      // Predicated region
      $region13: #{model_forward.1} parent=11 // pred_check
        %p206 = pneg %p60
      $region14: #{model_forward.1} parent=11 // pred_check_branch
        %208 = sbr.rel (%p206) target = $region16
      $region15: #{model_forward.1} parent=11 // pred_region
        _
      $region16: #{model_forward.1} parent=11 // pred_fallthru
        _
      // Predicated region
      $region17: #{model_forward.1} parent=11 // pred_check
        %p209 = pneg %p81
      $region18: #{model_forward.1} parent=11 // pred_check_branch
        %211 = sbr.rel (%p209) target = $region20
      $region19: #{model_forward.1} parent=11 // pred_region
        _
      $region20: #{model_forward.1} parent=11 // pred_fallthru
        _
      // Predicated region
      $region21: #{model_forward.1} parent=11 // pred_check
        %p212 = pneg %p102
      $region22: #{model_forward.1} parent=11 // pred_check_branch
        %214 = sbr.rel (%p212) target = $region24
      $region23: #{model_forward.1} parent=11 // pred_region
        _
      $region24: #{model_forward.1} parent=11 // pred_fallthru
        _
      // Predicated region
      $region25: #{model_forward.1} parent=11 // pred_check
        %p215 = pneg %p123
      $region26: #{model_forward.1} parent=11 // pred_check_branch
        %217 = sbr.rel (%p215) target = $region28
      $region27: #{model_forward.1} parent=11 // pred_region
        _
      $region28: #{model_forward.1} parent=11 // pred_fallthru
        _
      // Predicated region
      $region29: #{model_forward.1} parent=11 // pred_check
        %p218 = pneg %p144
      $region30: #{model_forward.1} parent=11 // pred_check_branch
        %220 = sbr.rel (%p218) target = $region32
      $region31: #{model_forward.1} parent=11 // pred_region
        _
      $region32: #{model_forward.1} parent=11 // pred_fallthru
        _
      // Predicated region
      $region33: #{model_forward.1} parent=11 // pred_check
        %p221 = pneg %p165
      $region34: #{model_forward.1} parent=11 // pred_check_branch
        %223 = sbr.rel (%p221) target = $region36
      $region35: #{model_forward.1} parent=11 // pred_region
        _
      $region36: #{model_forward.1} parent=11 // pred_fallthru
        _
    $region12: #{model_forward.1} parent=5 // pred_fallthru
      _
    %p224 = scmp.lt.s32.totalorder %s13, 2
    // Predicated region
    $region37: #{model_forward.1} parent=5 // pred_check
      %p225 = pneg %p224
    $region38: #{model_forward.1} parent=5 // pred_check_branch
      %227 = sbr.rel (%p225) target = $region40
    $region39: #{model_forward.1} parent=5 // pred_region
      // Predicated region
      $region41: #{model_forward.1} parent=39 // pred_check
        %p228 = pneg %p33
      $region42: #{model_forward.1} parent=39 // pred_check_branch
        %230 = sbr.rel (%p228) target = $region44
      $region43: #{model_forward.1} parent=39 // pred_region
        %p231 = scmp.lt.s32.totalorder %s13, 1
        %s232 = scalar_select %p231, %s13, 1
        %s233 = smul.addr %s232, 8
        %s234 = scalar_lea.vmem %s0, %s233
      $region44: #{model_forward.1} parent=39 // pred_fallthru
        _
    $region40: #{model_forward.1} parent=5 // pred_fallthru
      _
    %p235 = scmp.le.s32.totalorder 1, %s13
    %p236 = scmp.lt.s32.totalorder %s13, 3
    %p237 = pnand %p235, %p236
    %p238 = pneg %p237
    // Predicated region
    $region45: #{model_forward.1} parent=5 // pred_check
      _
    $region46: #{model_forward.1} parent=5 // pred_check_branch
      %240 = sbr.rel (%p237) target = $region48
    $region47: #{model_forward.1} parent=5 // pred_region
      %s241 = ssub.s32 %s13, 1
      %p242 = scmp.lt.s32.totalorder %s18, 1
      %s243 = scalar_select %p242, %s18, 1
      %s244 = smul.addr %s243, 8
      %s245 = scalar_lea.vmem %s0, %s244
      %p246 = pneg %p39
      %p247 = pneg %p36
      %p248 = pneg %p60
      %p249 = pneg %p57
      %p250 = pneg %p81
      %p251 = pneg %p78
      %p252 = pneg %p102
      %p253 = pneg %p99
      %p254 = pneg %p123
      %p255 = pneg %p120
      %p256 = pneg %p144
      %p257 = pneg %p141
      %p258 = pneg %p165
      %p259 = pneg %p162
      %p260 = pneg %p191
      %p261 = pneg %p188
      %p262 = scmp.lt.s32.totalorder %s18, 1
      %s263 = scalar_select %p262, %s18, 1
      %s264 = smul.addr %s263, 8
      %s265 = scalar_lea.vmem %s7, %s264
      %p266 = scmp.lt.s32.totalorder %s18, 1
      %s267 = scalar_select %p266, %s18, 1
      %s268 = smul.addr %s267, 8
      %s269 = scalar_lea.vmem %s0, %s268
      %p270 = scmp.lt.s32.totalorder %s18, 1
      %s271 = scalar_select %p270, %s18, 1
      %s272 = smul.addr %s271, 8
      %s273 = scalar_lea.vmem %s7, %s272
      %274 = vst [vmem:[#allocation2] sm:$0xff] 0.0
      %275 = vst [vmem:[#allocation2 + $0x8] sm:$0x3f] 0.0
      %v276 = vld [vmem:[%s269] sm:$0xff]
      %277 = vst [vmem:[#allocation2 + $0x3] sm:$0xff] %v276
      %v278 = vld [vmem:[#allocation2] sm:$0xff]
      %v279 = vld [vmem:[%s1] sm:$0xff]
      %v280 = vld [vmem:[%s1 + $0x8] sm:$0xff]
      %v281 = vld [vmem:[%s1 + $0x10] sm:$0xff]
      %v282 = vld [vmem:[%s1 + $0x18] sm:$0xff]
      %v283 = vld [vmem:[%s1 + $0x20] sm:$0xff]
      %v284 = vld [vmem:[%s1 + $0x28] sm:$0xff]
      %v285 = vld [vmem:[%s1 + $0x30] sm:$0xff]
      %v286 = vld [vmem:[%s1 + $0x38] sm:$0xff]
      %v287 = vld [vmem:[%s1 + $0x40] sm:$0xff]
      %v288 = vld [vmem:[%s1 + $0x48] sm:$0xff]
      %v289 = vld [vmem:[%s1 + $0x50] sm:$0xff]
      %v290 = vld [vmem:[%s1 + $0x58] sm:$0xff]
      %v291 = vld [vmem:[%s1 + $0x60] sm:$0xff]
      %v292 = vld [vmem:[%s1 + $0x68] sm:$0xff]
      %v293 = vld [vmem:[%s1 + $0x70] sm:$0xff]
      %v294 = vld [vmem:[%s1 + $0x78] sm:$0xff]
      %v295 = vld [vmem:[#allocation2 + $0x1] sm:$0xff]
      %s296 = scalar_lea.vmem %s1, 128
      %v297 = vld [vmem:[%s296] sm:$0xff]
      %v298 = vld [vmem:[%s296 + $0x8] sm:$0xff]
      %v299 = vld [vmem:[%s296 + $0x10] sm:$0xff]
      %v300 = vld [vmem:[%s296 + $0x18] sm:$0xff]
      %v301 = vld [vmem:[%s296 + $0x20] sm:$0xff]
      %v302 = vld [vmem:[%s296 + $0x28] sm:$0xff]
      %v303 = vld [vmem:[%s296 + $0x30] sm:$0xff]
      %v304 = vld [vmem:[%s296 + $0x38] sm:$0xff]
      %v305 = vld [vmem:[%s296 + $0x40] sm:$0xff]
      %v306 = vld [vmem:[%s296 + $0x48] sm:$0xff]
      %v307 = vld [vmem:[%s296 + $0x50] sm:$0xff]
      %v308 = vld [vmem:[%s296 + $0x58] sm:$0xff]
      %v309 = vld [vmem:[%s296 + $0x60] sm:$0xff]
      %v310 = vld [vmem:[%s296 + $0x68] sm:$0xff]
      %v311 = vld [vmem:[%s296 + $0x70] sm:$0xff]
      %v312 = vld [vmem:[%s296 + $0x78] sm:$0xff]
      %313 = vmatpush.msra.mxu0 %v312
      %314 = vmatpush.msra.mxu0 %v311
      %315 = vmatpush.msra.mxu0 %v310
      %316 = vmatpush.msra.mxu0 %v309
      %317 = vmatpush.msra.mxu0 %v308
      %318 = vmatpush.msra.mxu0 %v307
      %319 = vmatpush.msra.mxu0 %v306
      %320 = vmatpush.msra.mxu0 %v305
      %321 = vmatpush.msra.mxu0 %v304
      %322 = vmatpush.msra.mxu0 %v303
      %323 = vmatpush.msra.mxu0 %v302
      %324 = vmatpush.msra.mxu0 %v301
      %325 = vmatpush.msra.mxu0 %v300
      %326 = vmatpush.msra.mxu0 %v299
      %327 = vmatpush.msra.mxu0 %v298
      %328 = vmatpush.msra.mxu0 %v297
      %329 = vmatmul.f32.gmra.mxu0 %v295
      %v330 = vpop.f32.mrf.mxu0
      %v331 = vadd.f32 0.0, %v330
      %332 = vdwg.mxu0
      %333 = vmatpush.msra.mxu0 %v294
      %334 = vmatpush.msra.mxu0 %v293
      %335 = vmatpush.msra.mxu0 %v292
      %336 = vmatpush.msra.mxu0 %v291
      %337 = vmatpush.msra.mxu0 %v290
      %338 = vmatpush.msra.mxu0 %v289
      %339 = vmatpush.msra.mxu0 %v288
      %340 = vmatpush.msra.mxu0 %v287
      %341 = vmatpush.msra.mxu0 %v286
      %342 = vmatpush.msra.mxu0 %v285
      %343 = vmatpush.msra.mxu0 %v284
      %344 = vmatpush.msra.mxu0 %v283
      %345 = vmatpush.msra.mxu0 %v282
      %346 = vmatpush.msra.mxu0 %v281
      %347 = vmatpush.msra.mxu0 %v280
      %348 = vmatpush.msra.mxu0 %v279
      %349 = vmatmul.f32.gmra.mxu0 %v278
      %v350 = vpop.f32.mrf.mxu0
      %v351 = vadd.f32 %v331, %v350
      %352 = vdwg.mxu0
      %v353 = vld [vmem:[#allocation2 + $0x2] sm:$0xff]
      %s354 = scalar_lea.vmem %s1, 256
      %v355 = vld [vmem:[%s354] sm:$0xff]
      %v356 = vld [vmem:[%s354 + $0x8] sm:$0xff]
      %v357 = vld [vmem:[%s354 + $0x10] sm:$0xff]
      %v358 = vld [vmem:[%s354 + $0x18] sm:$0xff]
      %v359 = vld [vmem:[%s354 + $0x20] sm:$0xff]
      %v360 = vld [vmem:[%s354 + $0x28] sm:$0xff]
      %v361 = vld [vmem:[%s354 + $0x30] sm:$0xff]
      %v362 = vld [vmem:[%s354 + $0x38] sm:$0xff]
      %v363 = vld [vmem:[%s354 + $0x40] sm:$0xff]
      %v364 = vld [vmem:[%s354 + $0x48] sm:$0xff]
      %v365 = vld [vmem:[%s354 + $0x50] sm:$0xff]
      %v366 = vld [vmem:[%s354 + $0x58] sm:$0xff]
      %v367 = vld [vmem:[%s354 + $0x60] sm:$0xff]
      %v368 = vld [vmem:[%s354 + $0x68] sm:$0xff]
      %v369 = vld [vmem:[%s354 + $0x70] sm:$0xff]
      %v370 = vld [vmem:[%s354 + $0x78] sm:$0xff]
      %371 = vmatpush.msra.mxu0 %v370
      %372 = vmatpush.msra.mxu0 %v369
      %373 = vmatpush.msra.mxu0 %v368
      %374 = vmatpush.msra.mxu0 %v367
      %375 = vmatpush.msra.mxu0 %v366
      %376 = vmatpush.msra.mxu0 %v365
      %377 = vmatpush.msra.mxu0 %v364
      %378 = vmatpush.msra.mxu0 %v363
      %379 = vmatpush.msra.mxu0 %v362
      %380 = vmatpush.msra.mxu0 %v361
      %381 = vmatpush.msra.mxu0 %v360
      %382 = vmatpush.msra.mxu0 %v359
      %383 = vmatpush.msra.mxu0 %v358
      %384 = vmatpush.msra.mxu0 %v357
      %385 = vmatpush.msra.mxu0 %v356
      %386 = vmatpush.msra.mxu0 %v355
      %387 = vmatmul.f32.gmra.mxu0 %v353
      %v388 = vpop.f32.mrf.mxu0
      %v389 = vadd.f32 0.0, %v388
      %390 = vdwg.mxu0
      %v391 = vadd.f32 %v351, %v389
      %v392 = vld [vmem:[#allocation2 + $0x3] sm:$0xff]
      %s393 = scalar_lea.vmem %s1, 384
      %v394 = vld [vmem:[%s393] sm:$0xff]
      %v395 = vld [vmem:[%s393 + $0x8] sm:$0xff]
      %v396 = vld [vmem:[%s393 + $0x10] sm:$0xff]
      %v397 = vld [vmem:[%s393 + $0x18] sm:$0xff]
      %v398 = vld [vmem:[%s393 + $0x20] sm:$0xff]
      %v399 = vld [vmem:[%s393 + $0x28] sm:$0xff]
      %v400 = vld [vmem:[%s393 + $0x30] sm:$0xff]
      %v401 = vld [vmem:[%s393 + $0x38] sm:$0xff]
      %v402 = vld [vmem:[%s393 + $0x40] sm:$0xff]
      %v403 = vld [vmem:[%s393 + $0x48] sm:$0xff]
      %v404 = vld [vmem:[%s393 + $0x50] sm:$0xff]
      %v405 = vld [vmem:[%s393 + $0x58] sm:$0xff]
      %v406 = vld [vmem:[%s393 + $0x60] sm:$0xff]
      %v407 = vld [vmem:[%s393 + $0x68] sm:$0xff]
      %v408 = vld [vmem:[%s393 + $0x70] sm:$0xff]
      %v409 = vld [vmem:[%s393 + $0x78] sm:$0xff]
      %410 = vmatpush.msra.mxu0 %v409
      %411 = vmatpush.msra.mxu0 %v408
      %412 = vmatpush.msra.mxu0 %v407
      %413 = vmatpush.msra.mxu0 %v406
      %414 = vmatpush.msra.mxu0 %v405
      %415 = vmatpush.msra.mxu0 %v404
      %416 = vmatpush.msra.mxu0 %v403
      %417 = vmatpush.msra.mxu0 %v402
      %418 = vmatpush.msra.mxu0 %v401
      %419 = vmatpush.msra.mxu0 %v400
      %420 = vmatpush.msra.mxu0 %v399
      %421 = vmatpush.msra.mxu0 %v398
      %422 = vmatpush.msra.mxu0 %v397
      %423 = vmatpush.msra.mxu0 %v396
      %424 = vmatpush.msra.mxu0 %v395
      %425 = vmatpush.msra.mxu0 %v394
      %426 = vmatmul.f32.gmra.mxu0 %v392
      %v427 = vpop.f32.mrf.mxu0
      %v428 = vadd.f32 0.0, %v427
      %429 = vdwg.mxu0
      %v430 = vadd.f32 %v391, %v428
      %v431 = vld [vmem:[#allocation2 + $0x4] sm:$0xff]
      %s432 = scalar_lea.vmem %s1, 512
      %v433 = vld [vmem:[%s432] sm:$0xff]
      %v434 = vld [vmem:[%s432 + $0x8] sm:$0xff]
      %v435 = vld [vmem:[%s432 + $0x10] sm:$0xff]
      %v436 = vld [vmem:[%s432 + $0x18] sm:$0xff]
      %v437 = vld [vmem:[%s432 + $0x20] sm:$0xff]
      %v438 = vld [vmem:[%s432 + $0x28] sm:$0xff]
      %v439 = vld [vmem:[%s432 + $0x30] sm:$0xff]
      %v440 = vld [vmem:[%s432 + $0x38] sm:$0xff]
      %v441 = vld [vmem:[%s432 + $0x40] sm:$0xff]
      %v442 = vld [vmem:[%s432 + $0x48] sm:$0xff]
      %v443 = vld [vmem:[%s432 + $0x50] sm:$0xff]
      %v444 = vld [vmem:[%s432 + $0x58] sm:$0xff]
      %v445 = vld [vmem:[%s432 + $0x60] sm:$0xff]
      %v446 = vld [vmem:[%s432 + $0x68] sm:$0xff]
      %v447 = vld [vmem:[%s432 + $0x70] sm:$0xff]
      %v448 = vld [vmem:[%s432 + $0x78] sm:$0xff]
      %449 = vmatpush.msra.mxu0 %v448
      %450 = vmatpush.msra.mxu0 %v447
      %451 = vmatpush.msra.mxu0 %v446
      %452 = vmatpush.msra.mxu0 %v445
      %453 = vmatpush.msra.mxu0 %v444
      %454 = vmatpush.msra.mxu0 %v443
      %455 = vmatpush.msra.mxu0 %v442
      %456 = vmatpush.msra.mxu0 %v441
      %457 = vmatpush.msra.mxu0 %v440
      %458 = vmatpush.msra.mxu0 %v439
      %459 = vmatpush.msra.mxu0 %v438
      %460 = vmatpush.msra.mxu0 %v437
      %461 = vmatpush.msra.mxu0 %v436
      %462 = vmatpush.msra.mxu0 %v435
      %463 = vmatpush.msra.mxu0 %v434
      %464 = vmatpush.msra.mxu0 %v433
      %465 = vmatmul.f32.gmra.mxu0 %v431
      %v466 = vpop.f32.mrf.mxu0
      %v467 = vadd.f32 0.0, %v466
      %468 = vdwg.mxu0
      %v469 = vadd.f32 %v430, %v467
      %v470 = vld [vmem:[#allocation2 + $0x5] sm:$0xff]
      %s471 = scalar_lea.vmem %s1, 640
      %v472 = vld [vmem:[%s471] sm:$0xff]
      %v473 = vld [vmem:[%s471 + $0x8] sm:$0xff]
      %v474 = vld [vmem:[%s471 + $0x10] sm:$0xff]
      %v475 = vld [vmem:[%s471 + $0x18] sm:$0xff]
      %v476 = vld [vmem:[%s471 + $0x20] sm:$0xff]
      %v477 = vld [vmem:[%s471 + $0x28] sm:$0xff]
      %v478 = vld [vmem:[%s471 + $0x30] sm:$0xff]
      %v479 = vld [vmem:[%s471 + $0x38] sm:$0xff]
      %v480 = vld [vmem:[%s471 + $0x40] sm:$0xff]
      %v481 = vld [vmem:[%s471 + $0x48] sm:$0xff]
      %v482 = vld [vmem:[%s471 + $0x50] sm:$0xff]
      %v483 = vld [vmem:[%s471 + $0x58] sm:$0xff]
      %v484 = vld [vmem:[%s471 + $0x60] sm:$0xff]
      %v485 = vld [vmem:[%s471 + $0x68] sm:$0xff]
      %v486 = vld [vmem:[%s471 + $0x70] sm:$0xff]
      %v487 = vld [vmem:[%s471 + $0x78] sm:$0xff]
      %488 = vmatpush.msra.mxu0 %v487
      %489 = vmatpush.msra.mxu0 %v486
      %490 = vmatpush.msra.mxu0 %v485
      %491 = vmatpush.msra.mxu0 %v484
      %492 = vmatpush.msra.mxu0 %v483
      %493 = vmatpush.msra.mxu0 %v482
      %494 = vmatpush.msra.mxu0 %v481
      %495 = vmatpush.msra.mxu0 %v480
      %496 = vmatpush.msra.mxu0 %v479
      %497 = vmatpush.msra.mxu0 %v478
      %498 = vmatpush.msra.mxu0 %v477
      %499 = vmatpush.msra.mxu0 %v476
      %500 = vmatpush.msra.mxu0 %v475
      %501 = vmatpush.msra.mxu0 %v474
      %502 = vmatpush.msra.mxu0 %v473
      %503 = vmatpush.msra.mxu0 %v472
      %504 = vmatmul.f32.gmra.mxu0 %v470
      %v505 = vpop.f32.mrf.mxu0
      %v506 = vadd.f32 0.0, %v505
      %507 = vdwg.mxu0
      %v508 = vadd.f32 %v469, %v506
      %v509 = vld [vmem:[#allocation2 + $0x6] sm:$0xff]
      %s510 = scalar_lea.vmem %s1, 768
      %v511 = vld [vmem:[%s510] sm:$0xff]
      %v512 = vld [vmem:[%s510 + $0x8] sm:$0xff]
      %v513 = vld [vmem:[%s510 + $0x10] sm:$0xff]
      %v514 = vld [vmem:[%s510 + $0x18] sm:$0xff]
      %v515 = vld [vmem:[%s510 + $0x20] sm:$0xff]
      %v516 = vld [vmem:[%s510 + $0x28] sm:$0xff]
      %v517 = vld [vmem:[%s510 + $0x30] sm:$0xff]
      %v518 = vld [vmem:[%s510 + $0x38] sm:$0xff]
      %v519 = vld [vmem:[%s510 + $0x40] sm:$0xff]
      %v520 = vld [vmem:[%s510 + $0x48] sm:$0xff]
      %v521 = vld [vmem:[%s510 + $0x50] sm:$0xff]
      %v522 = vld [vmem:[%s510 + $0x58] sm:$0xff]
      %v523 = vld [vmem:[%s510 + $0x60] sm:$0xff]
      %v524 = vld [vmem:[%s510 + $0x68] sm:$0xff]
      %v525 = vld [vmem:[%s510 + $0x70] sm:$0xff]
      %v526 = vld [vmem:[%s510 + $0x78] sm:$0xff]
      %527 = vmatpush.msra.mxu0 %v526
      %528 = vmatpush.msra.mxu0 %v525
      %529 = vmatpush.msra.mxu0 %v524
      %530 = vmatpush.msra.mxu0 %v523
      %531 = vmatpush.msra.mxu0 %v522
      %532 = vmatpush.msra.mxu0 %v521
      %533 = vmatpush.msra.mxu0 %v520
      %534 = vmatpush.msra.mxu0 %v519
      %535 = vmatpush.msra.mxu0 %v518
      %536 = vmatpush.msra.mxu0 %v517
      %537 = vmatpush.msra.mxu0 %v516
      %538 = vmatpush.msra.mxu0 %v515
      %539 = vmatpush.msra.mxu0 %v514
      %540 = vmatpush.msra.mxu0 %v513
      %541 = vmatpush.msra.mxu0 %v512
      %542 = vmatpush.msra.mxu0 %v511
      %543 = vmatmul.f32.gmra.mxu0 %v509
      %v544 = vpop.f32.mrf.mxu0
      %v545 = vadd.f32 0.0, %v544
      %546 = vdwg.mxu0
      %v547 = vadd.f32 %v508, %v545
      %v548 = vld [vmem:[%s2] sm:$0x1]
      %v550 = vperm.slane %v548, 0
      %v552 = vadd.f32 %v547, %v550
      %553 = vst [vmem:[#allocation2 + $0x3] sm:$0xff] %v552
      %v554 = vld [vmem:[#allocation2] sm:$0xff]
      %v555 = vld [vmem:[%s3] sm:$0xff]
      %v556 = vld [vmem:[%s3 + $0x8] sm:$0xff]
      %v557 = vld [vmem:[%s3 + $0x10] sm:$0xff]
      %v558 = vld [vmem:[%s3 + $0x18] sm:$0xff]
      %v559 = vld [vmem:[%s3 + $0x20] sm:$0xff]
      %v560 = vld [vmem:[%s3 + $0x28] sm:$0xff]
      %v561 = vld [vmem:[%s3 + $0x30] sm:$0xff]
      %v562 = vld [vmem:[%s3 + $0x38] sm:$0xff]
      %v563 = vld [vmem:[%s3 + $0x40] sm:$0xff]
      %v564 = vld [vmem:[%s3 + $0x48] sm:$0xff]
      %v565 = vld [vmem:[%s3 + $0x50] sm:$0xff]
      %v566 = vld [vmem:[%s3 + $0x58] sm:$0xff]
      %v567 = vld [vmem:[%s3 + $0x60] sm:$0xff]
      %v568 = vld [vmem:[%s3 + $0x68] sm:$0xff]
      %v569 = vld [vmem:[%s3 + $0x70] sm:$0xff]
      %v570 = vld [vmem:[%s3 + $0x78] sm:$0xff]
      %v571 = vld [vmem:[#allocation2 + $0x1] sm:$0xff]
      %s572 = scalar_lea.vmem %s3, 128
      %v573 = vld [vmem:[%s572] sm:$0xff]
      %v574 = vld [vmem:[%s572 + $0x8] sm:$0xff]
      %v575 = vld [vmem:[%s572 + $0x10] sm:$0xff]
      %v576 = vld [vmem:[%s572 + $0x18] sm:$0xff]
      %v577 = vld [vmem:[%s572 + $0x20] sm:$0xff]
      %v578 = vld [vmem:[%s572 + $0x28] sm:$0xff]
      %v579 = vld [vmem:[%s572 + $0x30] sm:$0xff]
      %v580 = vld [vmem:[%s572 + $0x38] sm:$0xff]
      %v581 = vld [vmem:[%s572 + $0x40] sm:$0xff]
      %v582 = vld [vmem:[%s572 + $0x48] sm:$0xff]
      %v583 = vld [vmem:[%s572 + $0x50] sm:$0xff]
      %v584 = vld [vmem:[%s572 + $0x58] sm:$0xff]
      %v585 = vld [vmem:[%s572 + $0x60] sm:$0xff]
      %v586 = vld [vmem:[%s572 + $0x68] sm:$0xff]
      %v587 = vld [vmem:[%s572 + $0x70] sm:$0xff]
      %v588 = vld [vmem:[%s572 + $0x78] sm:$0xff]
      %589 = vmatpush.msra.mxu0 %v588
      %590 = vmatpush.msra.mxu0 %v587
      %591 = vmatpush.msra.mxu0 %v586
      %592 = vmatpush.msra.mxu0 %v585
      %593 = vmatpush.msra.mxu0 %v584
      %594 = vmatpush.msra.mxu0 %v583
      %595 = vmatpush.msra.mxu0 %v582
      %596 = vmatpush.msra.mxu0 %v581
      %597 = vmatpush.msra.mxu0 %v580
      %598 = vmatpush.msra.mxu0 %v579
      %599 = vmatpush.msra.mxu0 %v578
      %600 = vmatpush.msra.mxu0 %v577
      %601 = vmatpush.msra.mxu0 %v576
      %602 = vmatpush.msra.mxu0 %v575
      %603 = vmatpush.msra.mxu0 %v574
      %604 = vmatpush.msra.mxu0 %v573
      %605 = vmatmul.f32.gmra.mxu0 %v571
      %v606 = vpop.f32.mrf.mxu0
      %v607 = vadd.f32 0.0, %v606
      %608 = vdwg.mxu0
      %609 = vmatpush.msra.mxu0 %v570
      %610 = vmatpush.msra.mxu0 %v569
      %611 = vmatpush.msra.mxu0 %v568
      %612 = vmatpush.msra.mxu0 %v567
      %613 = vmatpush.msra.mxu0 %v566
      %614 = vmatpush.msra.mxu0 %v565
      %615 = vmatpush.msra.mxu0 %v564
      %616 = vmatpush.msra.mxu0 %v563
      %617 = vmatpush.msra.mxu0 %v562
      %618 = vmatpush.msra.mxu0 %v561
      %619 = vmatpush.msra.mxu0 %v560
      %620 = vmatpush.msra.mxu0 %v559
      %621 = vmatpush.msra.mxu0 %v558
      %622 = vmatpush.msra.mxu0 %v557
      %623 = vmatpush.msra.mxu0 %v556
      %624 = vmatpush.msra.mxu0 %v555
      %625 = vmatmul.f32.gmra.mxu0 %v554
      %v626 = vpop.f32.mrf.mxu0
      %v627 = vadd.f32 %v607, %v626
      %628 = vdwg.mxu0
      %v629 = vld [vmem:[#allocation2 + $0x2] sm:$0xff]
      %s630 = scalar_lea.vmem %s3, 256
      %v631 = vld [vmem:[%s630] sm:$0xff]
      %v632 = vld [vmem:[%s630 + $0x8] sm:$0xff]
      %v633 = vld [vmem:[%s630 + $0x10] sm:$0xff]
      %v634 = vld [vmem:[%s630 + $0x18] sm:$0xff]
      %v635 = vld [vmem:[%s630 + $0x20] sm:$0xff]
      %v636 = vld [vmem:[%s630 + $0x28] sm:$0xff]
      %v637 = vld [vmem:[%s630 + $0x30] sm:$0xff]
      %v638 = vld [vmem:[%s630 + $0x38] sm:$0xff]
      %v639 = vld [vmem:[%s630 + $0x40] sm:$0xff]
      %v640 = vld [vmem:[%s630 + $0x48] sm:$0xff]
      %v641 = vld [vmem:[%s630 + $0x50] sm:$0xff]
      %v642 = vld [vmem:[%s630 + $0x58] sm:$0xff]
      %v643 = vld [vmem:[%s630 + $0x60] sm:$0xff]
      %v644 = vld [vmem:[%s630 + $0x68] sm:$0xff]
      %v645 = vld [vmem:[%s630 + $0x70] sm:$0xff]
      %v646 = vld [vmem:[%s630 + $0x78] sm:$0xff]
      %647 = vmatpush.msra.mxu0 %v646
      %648 = vmatpush.msra.mxu0 %v645
      %649 = vmatpush.msra.mxu0 %v644
      %650 = vmatpush.msra.mxu0 %v643
      %651 = vmatpush.msra.mxu0 %v642
      %652 = vmatpush.msra.mxu0 %v641
      %653 = vmatpush.msra.mxu0 %v640
      %654 = vmatpush.msra.mxu0 %v639
      %655 = vmatpush.msra.mxu0 %v638
      %656 = vmatpush.msra.mxu0 %v637
      %657 = vmatpush.msra.mxu0 %v636
      %658 = vmatpush.msra.mxu0 %v635
      %659 = vmatpush.msra.mxu0 %v634
      %660 = vmatpush.msra.mxu0 %v633
      %661 = vmatpush.msra.mxu0 %v632
      %662 = vmatpush.msra.mxu0 %v631
      %663 = vmatmul.f32.gmra.mxu0 %v629
      %v664 = vpop.f32.mrf.mxu0
      %v665 = vadd.f32 0.0, %v664
      %666 = vdwg.mxu0
      %v667 = vadd.f32 %v627, %v665
      %v668 = vld [vmem:[#allocation2 + $0x3] sm:$0xff]
      %s669 = scalar_lea.vmem %s3, 384
      %v670 = vld [vmem:[%s669] sm:$0xff]
      %v671 = vld [vmem:[%s669 + $0x8] sm:$0xff]
      %v672 = vld [vmem:[%s669 + $0x10] sm:$0xff]
      %v673 = vld [vmem:[%s669 + $0x18] sm:$0xff]
      %v674 = vld [vmem:[%s669 + $0x20] sm:$0xff]
      %v675 = vld [vmem:[%s669 + $0x28] sm:$0xff]
      %v676 = vld [vmem:[%s669 + $0x30] sm:$0xff]
      %v677 = vld [vmem:[%s669 + $0x38] sm:$0xff]
      %v678 = vld [vmem:[%s669 + $0x40] sm:$0xff]
      %v679 = vld [vmem:[%s669 + $0x48] sm:$0xff]
      %v680 = vld [vmem:[%s669 + $0x50] sm:$0xff]
      %v681 = vld [vmem:[%s669 + $0x58] sm:$0xff]
      %v682 = vld [vmem:[%s669 + $0x60] sm:$0xff]
      %v683 = vld [vmem:[%s669 + $0x68] sm:$0xff]
      %v684 = vld [vmem:[%s669 + $0x70] sm:$0xff]
      %v685 = vld [vmem:[%s669 + $0x78] sm:$0xff]
      %686 = vmatpush.msra.mxu0 %v685
      %687 = vmatpush.msra.mxu0 %v684
      %688 = vmatpush.msra.mxu0 %v683
      %689 = vmatpush.msra.mxu0 %v682
      %690 = vmatpush.msra.mxu0 %v681
      %691 = vmatpush.msra.mxu0 %v680
      %692 = vmatpush.msra.mxu0 %v679
      %693 = vmatpush.msra.mxu0 %v678
      %694 = vmatpush.msra.mxu0 %v677
      %695 = vmatpush.msra.mxu0 %v676
      %696 = vmatpush.msra.mxu0 %v675
      %697 = vmatpush.msra.mxu0 %v674
      %698 = vmatpush.msra.mxu0 %v673
      %699 = vmatpush.msra.mxu0 %v672
      %700 = vmatpush.msra.mxu0 %v671
      %701 = vmatpush.msra.mxu0 %v670
      %702 = vmatmul.f32.gmra.mxu0 %v668
      %v703 = vpop.f32.mrf.mxu0
      %v704 = vadd.f32 0.0, %v703
      %705 = vdwg.mxu0
      %v706 = vadd.f32 %v667, %v704
      %v707 = vld [vmem:[#allocation2 + $0x4] sm:$0xff]
      %s708 = scalar_lea.vmem %s3, 512
      %v709 = vld [vmem:[%s708] sm:$0xff]
      %v710 = vld [vmem:[%s708 + $0x8] sm:$0xff]
      %v711 = vld [vmem:[%s708 + $0x10] sm:$0xff]
      %v712 = vld [vmem:[%s708 + $0x18] sm:$0xff]
      %v713 = vld [vmem:[%s708 + $0x20] sm:$0xff]
      %v714 = vld [vmem:[%s708 + $0x28] sm:$0xff]
      %v715 = vld [vmem:[%s708 + $0x30] sm:$0xff]
      %v716 = vld [vmem:[%s708 + $0x38] sm:$0xff]
      %v717 = vld [vmem:[%s708 + $0x40] sm:$0xff]
      %v718 = vld [vmem:[%s708 + $0x48] sm:$0xff]
      %v719 = vld [vmem:[%s708 + $0x50] sm:$0xff]
      %v720 = vld [vmem:[%s708 + $0x58] sm:$0xff]
      %v721 = vld [vmem:[%s708 + $0x60] sm:$0xff]
      %v722 = vld [vmem:[%s708 + $0x68] sm:$0xff]
      %v723 = vld [vmem:[%s708 + $0x70] sm:$0xff]
      %v724 = vld [vmem:[%s708 + $0x78] sm:$0xff]
      %725 = vmatpush.msra.mxu0 %v724
      %726 = vmatpush.msra.mxu0 %v723
      %727 = vmatpush.msra.mxu0 %v722
      %728 = vmatpush.msra.mxu0 %v721
      %729 = vmatpush.msra.mxu0 %v720
      %730 = vmatpush.msra.mxu0 %v719
      %731 = vmatpush.msra.mxu0 %v718
      %732 = vmatpush.msra.mxu0 %v717
      %733 = vmatpush.msra.mxu0 %v716
      %734 = vmatpush.msra.mxu0 %v715
      %735 = vmatpush.msra.mxu0 %v714
      %736 = vmatpush.msra.mxu0 %v713
      %737 = vmatpush.msra.mxu0 %v712
      %738 = vmatpush.msra.mxu0 %v711
      %739 = vmatpush.msra.mxu0 %v710
      %740 = vmatpush.msra.mxu0 %v709
      %741 = vmatmul.f32.gmra.mxu0 %v707
      %v742 = vpop.f32.mrf.mxu0
      %v743 = vadd.f32 0.0, %v742
      %744 = vdwg.mxu0
      %v745 = vadd.f32 %v706, %v743
      %v746 = vld [vmem:[#allocation2 + $0x5] sm:$0xff]
      %s747 = scalar_lea.vmem %s3, 640
      %v748 = vld [vmem:[%s747] sm:$0xff]
      %v749 = vld [vmem:[%s747 + $0x8] sm:$0xff]
      %v750 = vld [vmem:[%s747 + $0x10] sm:$0xff]
      %v751 = vld [vmem:[%s747 + $0x18] sm:$0xff]
      %v752 = vld [vmem:[%s747 + $0x20] sm:$0xff]
      %v753 = vld [vmem:[%s747 + $0x28] sm:$0xff]
      %v754 = vld [vmem:[%s747 + $0x30] sm:$0xff]
      %v755 = vld [vmem:[%s747 + $0x38] sm:$0xff]
      %v756 = vld [vmem:[%s747 + $0x40] sm:$0xff]
      %v757 = vld [vmem:[%s747 + $0x48] sm:$0xff]
      %v758 = vld [vmem:[%s747 + $0x50] sm:$0xff]
      %v759 = vld [vmem:[%s747 + $0x58] sm:$0xff]
      %v760 = vld [vmem:[%s747 + $0x60] sm:$0xff]
      %v761 = vld [vmem:[%s747 + $0x68] sm:$0xff]
      %v762 = vld [vmem:[%s747 + $0x70] sm:$0xff]
      %v763 = vld [vmem:[%s747 + $0x78] sm:$0xff]
      %764 = vmatpush.msra.mxu0 %v763
      %765 = vmatpush.msra.mxu0 %v762
      %766 = vmatpush.msra.mxu0 %v761
      %767 = vmatpush.msra.mxu0 %v760
      %768 = vmatpush.msra.mxu0 %v759
      %769 = vmatpush.msra.mxu0 %v758
      %770 = vmatpush.msra.mxu0 %v757
      %771 = vmatpush.msra.mxu0 %v756
      %772 = vmatpush.msra.mxu0 %v755
      %773 = vmatpush.msra.mxu0 %v754
      %774 = vmatpush.msra.mxu0 %v753
      %775 = vmatpush.msra.mxu0 %v752
      %776 = vmatpush.msra.mxu0 %v751
      %777 = vmatpush.msra.mxu0 %v750
      %778 = vmatpush.msra.mxu0 %v749
      %779 = vmatpush.msra.mxu0 %v748
      %780 = vmatmul.f32.gmra.mxu0 %v746
      %v781 = vpop.f32.mrf.mxu0
      %v782 = vadd.f32 0.0, %v781
      %783 = vdwg.mxu0
      %v784 = vadd.f32 %v745, %v782
      %v785 = vld [vmem:[#allocation2 + $0x6] sm:$0xff]
      %s786 = scalar_lea.vmem %s3, 768
      %v787 = vld [vmem:[%s786] sm:$0xff]
      %v788 = vld [vmem:[%s786 + $0x8] sm:$0xff]
      %v789 = vld [vmem:[%s786 + $0x10] sm:$0xff]
      %v790 = vld [vmem:[%s786 + $0x18] sm:$0xff]
      %v791 = vld [vmem:[%s786 + $0x20] sm:$0xff]
      %v792 = vld [vmem:[%s786 + $0x28] sm:$0xff]
      %v793 = vld [vmem:[%s786 + $0x30] sm:$0xff]
      %v794 = vld [vmem:[%s786 + $0x38] sm:$0xff]
      %v795 = vld [vmem:[%s786 + $0x40] sm:$0xff]
      %v796 = vld [vmem:[%s786 + $0x48] sm:$0xff]
      %v797 = vld [vmem:[%s786 + $0x50] sm:$0xff]
      %v798 = vld [vmem:[%s786 + $0x58] sm:$0xff]
      %v799 = vld [vmem:[%s786 + $0x60] sm:$0xff]
      %v800 = vld [vmem:[%s786 + $0x68] sm:$0xff]
      %v801 = vld [vmem:[%s786 + $0x70] sm:$0xff]
      %v802 = vld [vmem:[%s786 + $0x78] sm:$0xff]
      %803 = vmatpush.msra.mxu0 %v802
      %804 = vmatpush.msra.mxu0 %v801
      %805 = vmatpush.msra.mxu0 %v800
      %806 = vmatpush.msra.mxu0 %v799
      %807 = vmatpush.msra.mxu0 %v798
      %808 = vmatpush.msra.mxu0 %v797
      %809 = vmatpush.msra.mxu0 %v796
      %810 = vmatpush.msra.mxu0 %v795
      %811 = vmatpush.msra.mxu0 %v794
      %812 = vmatpush.msra.mxu0 %v793
      %813 = vmatpush.msra.mxu0 %v792
      %814 = vmatpush.msra.mxu0 %v791
      %815 = vmatpush.msra.mxu0 %v790
      %816 = vmatpush.msra.mxu0 %v789
      %817 = vmatpush.msra.mxu0 %v788
      %818 = vmatpush.msra.mxu0 %v787
      %819 = vmatmul.f32.gmra.mxu0 %v785
      %v820 = vpop.f32.mrf.mxu0
      %v821 = vadd.f32 0.0, %v820
      %822 = vdwg.mxu0
      %v823 = vadd.f32 %v784, %v821
      %v824 = vld [vmem:[%s4] sm:$0x1]
      %v826 = vperm.slane %v824, 0
      %v828 = vadd.f32 %v823, %v826
      %v829 = vadd.f32 %v828, %v276
      %v830 = vmax.f32 %v829, 0.0
      %831 = vst [vmem:[#allocation2 + $0x3] sm:$0xff] %v830
      %v832 = vld [vmem:[#allocation2] sm:$0xff]
      %v833 = vld [vmem:[%s5] sm:$0xff]
      %v834 = vld [vmem:[%s5 + $0x8] sm:$0xff]
      %v835 = vld [vmem:[%s5 + $0x10] sm:$0xff]
      %v836 = vld [vmem:[%s5 + $0x18] sm:$0xff]
      %v837 = vld [vmem:[%s5 + $0x20] sm:$0xff]
      %v838 = vld [vmem:[%s5 + $0x28] sm:$0xff]
      %v839 = vld [vmem:[%s5 + $0x30] sm:$0xff]
      %v840 = vld [vmem:[%s5 + $0x38] sm:$0xff]
      %v841 = vld [vmem:[%s5 + $0x40] sm:$0xff]
      %v842 = vld [vmem:[%s5 + $0x48] sm:$0xff]
      %v843 = vld [vmem:[%s5 + $0x50] sm:$0xff]
      %v844 = vld [vmem:[%s5 + $0x58] sm:$0xff]
      %v845 = vld [vmem:[%s5 + $0x60] sm:$0xff]
      %v846 = vld [vmem:[%s5 + $0x68] sm:$0xff]
      %v847 = vld [vmem:[%s5 + $0x70] sm:$0xff]
      %v848 = vld [vmem:[%s5 + $0x78] sm:$0xff]
      %v849 = vld [vmem:[#allocation2 + $0x1] sm:$0xff]
      %s850 = scalar_lea.vmem %s5, 128
      %v851 = vld [vmem:[%s850] sm:$0xff]
      %v852 = vld [vmem:[%s850 + $0x8] sm:$0xff]
      %v853 = vld [vmem:[%s850 + $0x10] sm:$0xff]
      %v854 = vld [vmem:[%s850 + $0x18] sm:$0xff]
      %v855 = vld [vmem:[%s850 + $0x20] sm:$0xff]
      %v856 = vld [vmem:[%s850 + $0x28] sm:$0xff]
      %v857 = vld [vmem:[%s850 + $0x30] sm:$0xff]
      %v858 = vld [vmem:[%s850 + $0x38] sm:$0xff]
      %v859 = vld [vmem:[%s850 + $0x40] sm:$0xff]
      %v860 = vld [vmem:[%s850 + $0x48] sm:$0xff]
      %v861 = vld [vmem:[%s850 + $0x50] sm:$0xff]
      %v862 = vld [vmem:[%s850 + $0x58] sm:$0xff]
      %v863 = vld [vmem:[%s850 + $0x60] sm:$0xff]
      %v864 = vld [vmem:[%s850 + $0x68] sm:$0xff]
      %v865 = vld [vmem:[%s850 + $0x70] sm:$0xff]
      %v866 = vld [vmem:[%s850 + $0x78] sm:$0xff]
      %867 = vmatpush.msra.mxu0 %v866
      %868 = vmatpush.msra.mxu0 %v865
      %869 = vmatpush.msra.mxu0 %v864
      %870 = vmatpush.msra.mxu0 %v863
      %871 = vmatpush.msra.mxu0 %v862
      %872 = vmatpush.msra.mxu0 %v861
      %873 = vmatpush.msra.mxu0 %v860
      %874 = vmatpush.msra.mxu0 %v859
      %875 = vmatpush.msra.mxu0 %v858
      %876 = vmatpush.msra.mxu0 %v857
      %877 = vmatpush.msra.mxu0 %v856
      %878 = vmatpush.msra.mxu0 %v855
      %879 = vmatpush.msra.mxu0 %v854
      %880 = vmatpush.msra.mxu0 %v853
      %881 = vmatpush.msra.mxu0 %v852
      %882 = vmatpush.msra.mxu0 %v851
      %883 = vmatmul.f32.gmra.mxu0 %v849
      %v884 = vpop.f32.mrf.mxu0
      %v885 = vadd.f32 0.0, %v884
      %886 = vdwg.mxu0
      %887 = vmatpush.msra.mxu0 %v848
      %888 = vmatpush.msra.mxu0 %v847
      %889 = vmatpush.msra.mxu0 %v846
      %890 = vmatpush.msra.mxu0 %v845
      %891 = vmatpush.msra.mxu0 %v844
      %892 = vmatpush.msra.mxu0 %v843
      %893 = vmatpush.msra.mxu0 %v842
      %894 = vmatpush.msra.mxu0 %v841
      %895 = vmatpush.msra.mxu0 %v840
      %896 = vmatpush.msra.mxu0 %v839
      %897 = vmatpush.msra.mxu0 %v838
      %898 = vmatpush.msra.mxu0 %v837
      %899 = vmatpush.msra.mxu0 %v836
      %900 = vmatpush.msra.mxu0 %v835
      %901 = vmatpush.msra.mxu0 %v834
      %902 = vmatpush.msra.mxu0 %v833
      %903 = vmatmul.f32.gmra.mxu0 %v832
      %v904 = vpop.f32.mrf.mxu0
      %v905 = vadd.f32 %v885, %v904
      %906 = vdwg.mxu0
      %v907 = vld [vmem:[#allocation2 + $0x2] sm:$0xff]
      %s908 = scalar_lea.vmem %s5, 256
      %v909 = vld [vmem:[%s908] sm:$0xff]
      %v910 = vld [vmem:[%s908 + $0x8] sm:$0xff]
      %v911 = vld [vmem:[%s908 + $0x10] sm:$0xff]
      %v912 = vld [vmem:[%s908 + $0x18] sm:$0xff]
      %v913 = vld [vmem:[%s908 + $0x20] sm:$0xff]
      %v914 = vld [vmem:[%s908 + $0x28] sm:$0xff]
      %v915 = vld [vmem:[%s908 + $0x30] sm:$0xff]
      %v916 = vld [vmem:[%s908 + $0x38] sm:$0xff]
      %v917 = vld [vmem:[%s908 + $0x40] sm:$0xff]
      %v918 = vld [vmem:[%s908 + $0x48] sm:$0xff]
      %v919 = vld [vmem:[%s908 + $0x50] sm:$0xff]
      %v920 = vld [vmem:[%s908 + $0x58] sm:$0xff]
      %v921 = vld [vmem:[%s908 + $0x60] sm:$0xff]
      %v922 = vld [vmem:[%s908 + $0x68] sm:$0xff]
      %v923 = vld [vmem:[%s908 + $0x70] sm:$0xff]
      %v924 = vld [vmem:[%s908 + $0x78] sm:$0xff]
      %925 = vmatpush.msra.mxu0 %v924
      %926 = vmatpush.msra.mxu0 %v923
      %927 = vmatpush.msra.mxu0 %v922
      %928 = vmatpush.msra.mxu0 %v921
      %929 = vmatpush.msra.mxu0 %v920
      %930 = vmatpush.msra.mxu0 %v919
      %931 = vmatpush.msra.mxu0 %v918
      %932 = vmatpush.msra.mxu0 %v917
      %933 = vmatpush.msra.mxu0 %v916
      %934 = vmatpush.msra.mxu0 %v915
      %935 = vmatpush.msra.mxu0 %v914
      %936 = vmatpush.msra.mxu0 %v913
      %937 = vmatpush.msra.mxu0 %v912
      %938 = vmatpush.msra.mxu0 %v911
      %939 = vmatpush.msra.mxu0 %v910
      %940 = vmatpush.msra.mxu0 %v909
      %941 = vmatmul.f32.gmra.mxu0 %v907
      %v942 = vpop.f32.mrf.mxu0
      %v943 = vadd.f32 0.0, %v942
      %944 = vdwg.mxu0
      %v945 = vadd.f32 %v905, %v943
      %v946 = vld [vmem:[#allocation2 + $0x3] sm:$0xff]
      %s947 = scalar_lea.vmem %s5, 384
      %v948 = vld [vmem:[%s947] sm:$0xff]
      %v949 = vld [vmem:[%s947 + $0x8] sm:$0xff]
      %v950 = vld [vmem:[%s947 + $0x10] sm:$0xff]
      %v951 = vld [vmem:[%s947 + $0x18] sm:$0xff]
      %v952 = vld [vmem:[%s947 + $0x20] sm:$0xff]
      %v953 = vld [vmem:[%s947 + $0x28] sm:$0xff]
      %v954 = vld [vmem:[%s947 + $0x30] sm:$0xff]
      %v955 = vld [vmem:[%s947 + $0x38] sm:$0xff]
      %v956 = vld [vmem:[%s947 + $0x40] sm:$0xff]
      %v957 = vld [vmem:[%s947 + $0x48] sm:$0xff]
      %v958 = vld [vmem:[%s947 + $0x50] sm:$0xff]
      %v959 = vld [vmem:[%s947 + $0x58] sm:$0xff]
      %v960 = vld [vmem:[%s947 + $0x60] sm:$0xff]
      %v961 = vld [vmem:[%s947 + $0x68] sm:$0xff]
      %v962 = vld [vmem:[%s947 + $0x70] sm:$0xff]
      %v963 = vld [vmem:[%s947 + $0x78] sm:$0xff]
      %964 = vmatpush.msra.mxu0 %v963
      %965 = vmatpush.msra.mxu0 %v962
      %966 = vmatpush.msra.mxu0 %v961
      %967 = vmatpush.msra.mxu0 %v960
      %968 = vmatpush.msra.mxu0 %v959
      %969 = vmatpush.msra.mxu0 %v958
      %970 = vmatpush.msra.mxu0 %v957
      %971 = vmatpush.msra.mxu0 %v956
      %972 = vmatpush.msra.mxu0 %v955
      %973 = vmatpush.msra.mxu0 %v954
      %974 = vmatpush.msra.mxu0 %v953
      %975 = vmatpush.msra.mxu0 %v952
      %976 = vmatpush.msra.mxu0 %v951
      %977 = vmatpush.msra.mxu0 %v950
      %978 = vmatpush.msra.mxu0 %v949
      %979 = vmatpush.msra.mxu0 %v948
      %980 = vmatmul.f32.gmra.mxu0 %v946
      %v981 = vpop.f32.mrf.mxu0
      %v982 = vadd.f32 0.0, %v981
      %983 = vdwg.mxu0
      %v984 = vadd.f32 %v945, %v982
      %v985 = vld [vmem:[#allocation2 + $0x4] sm:$0xff]
      %s986 = scalar_lea.vmem %s5, 512
      %v987 = vld [vmem:[%s986] sm:$0xff]
      %v988 = vld [vmem:[%s986 + $0x8] sm:$0xff]
      %v989 = vld [vmem:[%s986 + $0x10] sm:$0xff]
      %v990 = vld [vmem:[%s986 + $0x18] sm:$0xff]
      %v991 = vld [vmem:[%s986 + $0x20] sm:$0xff]
      %v992 = vld [vmem:[%s986 + $0x28] sm:$0xff]
      %v993 = vld [vmem:[%s986 + $0x30] sm:$0xff]
      %v994 = vld [vmem:[%s986 + $0x38] sm:$0xff]
      %v995 = vld [vmem:[%s986 + $0x40] sm:$0xff]
      %v996 = vld [vmem:[%s986 + $0x48] sm:$0xff]
      %v997 = vld [vmem:[%s986 + $0x50] sm:$0xff]
      %v998 = vld [vmem:[%s986 + $0x58] sm:$0xff]
      %v999 = vld [vmem:[%s986 + $0x60] sm:$0xff]
      %v1000 = vld [vmem:[%s986 + $0x68] sm:$0xff]
      %v1001 = vld [vmem:[%s986 + $0x70] sm:$0xff]
      %v1002 = vld [vmem:[%s986 + $0x78] sm:$0xff]
      %1003 = vmatpush.msra.mxu0 %v1002
      %1004 = vmatpush.msra.mxu0 %v1001
      %1005 = vmatpush.msra.mxu0 %v1000
      %1006 = vmatpush.msra.mxu0 %v999
      %1007 = vmatpush.msra.mxu0 %v998
      %1008 = vmatpush.msra.mxu0 %v997
      %1009 = vmatpush.msra.mxu0 %v996
      %1010 = vmatpush.msra.mxu0 %v995
      %1011 = vmatpush.msra.mxu0 %v994
      %1012 = vmatpush.msra.mxu0 %v993
      %1013 = vmatpush.msra.mxu0 %v992
      %1014 = vmatpush.msra.mxu0 %v991
      %1015 = vmatpush.msra.mxu0 %v990
      %1016 = vmatpush.msra.mxu0 %v989
      %1017 = vmatpush.msra.mxu0 %v988
      %1018 = vmatpush.msra.mxu0 %v987
      %1019 = vmatmul.f32.gmra.mxu0 %v985
      %v1020 = vpop.f32.mrf.mxu0
      %v1021 = vadd.f32 0.0, %v1020
      %1022 = vdwg.mxu0
      %v1023 = vadd.f32 %v984, %v1021
      %v1024 = vld [vmem:[#allocation2 + $0x5] sm:$0xff]
      %s1025 = scalar_lea.vmem %s5, 640
      %v1026 = vld [vmem:[%s1025] sm:$0xff]
      %v1027 = vld [vmem:[%s1025 + $0x8] sm:$0xff]
      %v1028 = vld [vmem:[%s1025 + $0x10] sm:$0xff]
      %v1029 = vld [vmem:[%s1025 + $0x18] sm:$0xff]
      %v1030 = vld [vmem:[%s1025 + $0x20] sm:$0xff]
      %v1031 = vld [vmem:[%s1025 + $0x28] sm:$0xff]
      %v1032 = vld [vmem:[%s1025 + $0x30] sm:$0xff]
      %v1033 = vld [vmem:[%s1025 + $0x38] sm:$0xff]
      %v1034 = vld [vmem:[%s1025 + $0x40] sm:$0xff]
      %v1035 = vld [vmem:[%s1025 + $0x48] sm:$0xff]
      %v1036 = vld [vmem:[%s1025 + $0x50] sm:$0xff]
      %v1037 = vld [vmem:[%s1025 + $0x58] sm:$0xff]
      %v1038 = vld [vmem:[%s1025 + $0x60] sm:$0xff]
      %v1039 = vld [vmem:[%s1025 + $0x68] sm:$0xff]
      %v1040 = vld [vmem:[%s1025 + $0x70] sm:$0xff]
      %v1041 = vld [vmem:[%s1025 + $0x78] sm:$0xff]
      %1042 = vmatpush.msra.mxu0 %v1041
      %1043 = vmatpush.msra.mxu0 %v1040
      %1044 = vmatpush.msra.mxu0 %v1039
      %1045 = vmatpush.msra.mxu0 %v1038
      %1046 = vmatpush.msra.mxu0 %v1037
      %1047 = vmatpush.msra.mxu0 %v1036
      %1048 = vmatpush.msra.mxu0 %v1035
      %1049 = vmatpush.msra.mxu0 %v1034
      %1050 = vmatpush.msra.mxu0 %v1033
      %1051 = vmatpush.msra.mxu0 %v1032
      %1052 = vmatpush.msra.mxu0 %v1031
      %1053 = vmatpush.msra.mxu0 %v1030
      %1054 = vmatpush.msra.mxu0 %v1029
      %1055 = vmatpush.msra.mxu0 %v1028
      %1056 = vmatpush.msra.mxu0 %v1027
      %1057 = vmatpush.msra.mxu0 %v1026
      %1058 = vmatmul.f32.gmra.mxu0 %v1024
      %v1059 = vpop.f32.mrf.mxu0
      %v1060 = vadd.f32 0.0, %v1059
      %1061 = vdwg.mxu0
      %v1062 = vadd.f32 %v1023, %v1060
      %v1063 = vld [vmem:[#allocation2 + $0x6] sm:$0xff]
      %s1064 = scalar_lea.vmem %s5, 768
      %v1065 = vld [vmem:[%s1064] sm:$0xff]
      %v1066 = vld [vmem:[%s1064 + $0x8] sm:$0xff]
      %v1067 = vld [vmem:[%s1064 + $0x10] sm:$0xff]
      %v1068 = vld [vmem:[%s1064 + $0x18] sm:$0xff]
      %v1069 = vld [vmem:[%s1064 + $0x20] sm:$0xff]
      %v1070 = vld [vmem:[%s1064 + $0x28] sm:$0xff]
      %v1071 = vld [vmem:[%s1064 + $0x30] sm:$0xff]
      %v1072 = vld [vmem:[%s1064 + $0x38] sm:$0xff]
      %v1073 = vld [vmem:[%s1064 + $0x40] sm:$0xff]
      %v1074 = vld [vmem:[%s1064 + $0x48] sm:$0xff]
      %v1075 = vld [vmem:[%s1064 + $0x50] sm:$0xff]
      %v1076 = vld [vmem:[%s1064 + $0x58] sm:$0xff]
      %v1077 = vld [vmem:[%s1064 + $0x60] sm:$0xff]
      %v1078 = vld [vmem:[%s1064 + $0x68] sm:$0xff]
      %v1079 = vld [vmem:[%s1064 + $0x70] sm:$0xff]
      %v1080 = vld [vmem:[%s1064 + $0x78] sm:$0xff]
      %1081 = vmatpush.msra.mxu0 %v1080
      %1082 = vmatpush.msra.mxu0 %v1079
      %1083 = vmatpush.msra.mxu0 %v1078
      %1084 = vmatpush.msra.mxu0 %v1077
      %1085 = vmatpush.msra.mxu0 %v1076
      %1086 = vmatpush.msra.mxu0 %v1075
      %1087 = vmatpush.msra.mxu0 %v1074
      %1088 = vmatpush.msra.mxu0 %v1073
      %1089 = vmatpush.msra.mxu0 %v1072
      %1090 = vmatpush.msra.mxu0 %v1071
      %1091 = vmatpush.msra.mxu0 %v1070
      %1092 = vmatpush.msra.mxu0 %v1069
      %1093 = vmatpush.msra.mxu0 %v1068
      %1094 = vmatpush.msra.mxu0 %v1067
      %1095 = vmatpush.msra.mxu0 %v1066
      %1096 = vmatpush.msra.mxu0 %v1065
      %1097 = vmatmul.f32.gmra.mxu0 %v1063
      %v1098 = vpop.f32.mrf.mxu0
      %v1099 = vadd.f32 0.0, %v1098
      %1100 = vdwg.mxu0
      %v1101 = vadd.f32 %v1062, %v1099
      %v1102 = vld [vmem:[%s6] sm:$0x1]
      %v1104 = vperm.slane %v1102, 0
      %v1106 = vadd.f32 %v1101, %v1104
      %v1107 = vadd.f32 %v1106, %v276
      %1108 = vst [vmem:[%s273] sm:$0xff] %v1107
      %p1109 = scmp.lt.s32.totalorder %s18, 1
      %s1110 = scalar_select %p1109, %s18, 1
      %s1111 = smul.addr %s1110, 8
      %s1112 = scalar_lea.vmem %s7, %s1111
      // Predicated region
      $region49: #{model_forward.1} parent=47 // pred_check
        %p1113 = pneg %p188
      $region50: #{model_forward.1} parent=47 // pred_check_branch
        %1115 = sbr.rel (%p1113) target = $region52
      $region51: #{model_forward.1} parent=47 // pred_region
        _
      $region52: #{model_forward.1} parent=47 // pred_fallthru
        _
    $region48: #{model_forward.1} parent=5 // pred_fallthru
      _
    %p1116 = scmp.le.s32.totalorder 2, %s13
    // Predicated region
    $region53: #{model_forward.1} parent=5 // pred_check
      %p1117 = pneg %p1116
    $region54: #{model_forward.1} parent=5 // pred_check_branch
      %1119 = sbr.rel (%p1117) target = $region56
    $region55: #{model_forward.1} parent=5 // pred_region
      %s1120 = ssub.s32 %s13, 2
      // Predicated region
      $region57: #{model_forward.1} parent=55 // pred_check
        %p1121 = pneg %p194
      $region58: #{model_forward.1} parent=55 // pred_check_branch
        %1123 = sbr.rel (%p1121) target = $region60
      $region59: #{model_forward.1} parent=55 // pred_region
        %p1124 = scmp.lt.s32.totalorder %s19, 1
        %s1125 = scalar_select %p1124, %s19, 1
        %s1126 = smul.addr %s1125, 8
        %s1127 = scalar_lea.vmem %s7, %s1126
      $region60: #{model_forward.1} parent=55 // pred_fallthru
        _
    $region56: #{model_forward.1} parent=5 // pred_fallthru
      _
  $region6: #{model_forward.1} parent=0 // loop_footer
    %s17 = sadd.s32 1, %s13
  $region7: #{model_forward.1} parent=0 // loop_footer_branch
    %12 = sbr.rel target = $region3
  $region8: #{model_forward.1} parent=0 // loop_exit
    _

</llo_original>
